<compile_context>
chip_gen: v7x
topology: tpu7x:2x2x1
jax: 0.10.0
libtpu: 0.0.40
codegen_flags: <defaults>
</compile_context>

<pallas_src>
import functools
import math

import numpy as np
import jax
import jax.numpy as jnp
from jax import lax
from jax.experimental import pallas as pl
from jax.experimental.pallas import tpu as pltpu


# ----------------------------------------------------------------------------
# small helpers
# ----------------------------------------------------------------------------
def _informer_sizes(L_Q, L_K, factor):
    U_part = min(int(factor * np.ceil(np.log(L_K))), L_K)
    u = min(int(factor * np.ceil(np.log(L_Q))), L_Q)
    return U_part, u


def _sample_indices(key, L_Q, U_part, L_K):
    # torch.randint(L_K, (L_Q, sample_k)) equivalent; shared across B and H.
    return jax.random.randint(key, (L_Q, U_part), 0, L_K, dtype=jnp.int32)


def _choose_q_tile(L, target=512):
    """Largest L_Q tile <= target that divides L and keeps the sublane dim a
    multiple of 8 (or the full axis, which Pallas always accepts)."""
    if L <= target:
        return L
    for t in range(target, 0, -1):
        if L % t == 0 and t % 8 == 0:
            return t
    return L


def _vmem_limit_bytes():
    # Explicit scoped-VMEM limit (default is only 16/32 MiB). Leave ~1/8 headroom
    # for double-buffering / internal scratch and cap at 100 MiB (respects v7x's
    # smaller 64 MiB physical VMEM via the hardware query).
    try:
        cap = int(pltpu.get_tpu_info().vmem_capacity_bytes)
    except Exception:
        cap = 64 * 1024 * 1024
    return int(min(cap - cap // 8, 100 * 1024 * 1024))


# ----------------------------------------------------------------------------
# Kernel 1: sparsity measure  M[q] = max_s(Q[q]·K[idx[q,s]]) - sum_s(...)/L_K
# ----------------------------------------------------------------------------
def _measure_kernel_gather(q_ref, k_ref, idx_ref, m_ref, *, inv_L_K):
    # q_ref: (1,1,tq,D)  k_ref: (1,1,L_K,D)  idx_ref: (tq,U_part) i32  m_ref: (1,1,tq,1)
    q = q_ref[0, 0].astype(jnp.float32)
    k = k_ref[0, 0].astype(jnp.float32)
    # Full tile scores on the MXU (contraction over D; K consumed without explicit .T).
    s = lax.dot_general(q, k, (((1,), (1,)), ((), ())),
                        preferred_element_type=jnp.float32)          # (tq, L_K)
    # Pick the sampled columns in-kernel (compact int32 indices instead of a
    # wrapper-materialized K_sample tensor).
    qk_samp = jnp.take_along_axis(s, idx_ref[...], axis=-1)          # (tq, U_part)
    m = jnp.max(qk_samp, axis=-1) - jnp.sum(qk_samp, axis=-1) * inv_L_K
    # NOTE: M is only L_Q*4 B per head, so the narrow (tq, 1) store layout is
    # immaterial for bandwidth.
    m_ref[0, 0] = m[:, None].astype(m_ref.dtype)


def _measure_kernel_dense(q_ref, ks_ref, m_ref, *, inv_L_K):
    # Fallback (wrapper-gathered K_sample, tiled over L_Q). Used only if the
    # in-kernel gather does not lower on the installed Mosaic build.
    q = q_ref[0, 0].astype(jnp.float32)            # (tq, D)
    ks = ks_ref[0, 0].astype(jnp.float32)          # (tq, U_part, D)
    qk = jnp.sum(q[:, None, :] * ks, axis=-1)      # (tq, U_part)
    m = jnp.max(qk, axis=-1) - jnp.sum(qk, axis=-1) * inv_L_K
    m_ref[0, 0] = m[:, None].astype(m_ref.dtype)


_K1_IN_KERNEL_GATHER = None  # None = untested, True/False once probed


def _sparsity_measure(Q, K, index_sample, tq):
    """Returns M[b, h, q] (f32, shape [B, H, L_Q])."""
    global _K1_IN_KERNEL_GATHER
    B, H, L_Q, D = Q.shape
    L_K = K.shape[2]
    U_part = index_sample.shape[1]
    n_qt = L_Q // tq
    grid = (B, H, n_qt)
    params = pltpu.CompilerParams(
        dimension_semantics=("parallel", "parallel", "parallel"),
        vmem_limit_bytes=_vmem_limit_bytes())
    out_shape = jax.ShapeDtypeStruct((B, H, L_Q, 1), jnp.float32)
    out_spec = pl.BlockSpec((1, 1, tq, 1), lambda b, h, q: (b, h, q, 0))
    q_spec = pl.BlockSpec((1, 1, tq, D), lambda b, h, q: (b, h, q, 0))

    if _K1_IN_KERNEL_GATHER is not False:
        try:
            M = pl.pallas_call(
                functools.partial(_measure_kernel_gather, inv_L_K=1.0 / L_K),
                out_shape=out_shape,
                grid=grid,
                in_specs=[
                    q_spec,
                    # K stays a (1,1,L_K,D) block, fetched once per (b,h)
                    pl.BlockSpec((1, 1, L_K, D), lambda b, h, q: (b, h, 0, 0)),
                    # compact sample indices (shared across b,h), tiled over L_Q
                    pl.BlockSpec((tq, U_part), lambda b, h, q: (q, 0)),
                ],
                out_specs=out_spec,
                compiler_params=params,
            )(Q, K, index_sample)
            M = jax.block_until_ready(M)
            _K1_IN_KERNEL_GATHER = True
            return M[..., 0]
        except Exception:
            # In-kernel gather not supported by this Mosaic build -> dense fallback.
            _K1_IN_KERNEL_GATHER = False

    K_sample = K[:, :, index_sample, :]                      # [B,H,L_Q,U_part,D]
    M = pl.pallas_call(
        functools.partial(_measure_kernel_dense, inv_L_K=1.0 / L_K),
        out_shape=out_shape,
        grid=grid,
        in_specs=[
            q_spec,
            pl.BlockSpec((1, 1, tq, U_part, D), lambda b, h, q: (b, h, q, 0, 0)),
        ],
        out_specs=out_spec,
        compiler_params=params,
    )(Q, K_sample)
    return M[..., 0]


# ----------------------------------------------------------------------------
# Kernel 2: prob-sparse attention on the top-u queries + cumsum(V) context,
#           tiled over L_Q with a running-sum carry; mask / one-hot scatter are
#           rebuilt in-kernel from the compact top-u indices.
# ----------------------------------------------------------------------------
def _attn_context_kernel(qr_ref, k_ref, v_ref, mts_ref, mtl_ref, ctx_ref,
                         att_ref, vsum_ref, *, scale, mxu_dtype, approx_recip):
    # qr_ref : (1,1,u,D)       k_ref/v_ref : (1,1,L_K,D)  (resident per (b,h))
    # mts_ref: (1,1,u,1) i32   mtl_ref     : (1,1,1,u) i32 (top-u query positions)
    # ctx_ref: (1,1,tq,D)      att_ref     : (u,D) f32     vsum_ref: (1,D) f32
    qi = pl.program_id(2)
    tq = ctx_ref.shape[2]

    # -------- once per (b,h): scores, softmax, attended values (kept in scratch)
    @pl.when(qi == 0)
    def _():
        qr = qr_ref[0, 0].astype(mxu_dtype)                        # (u, D)
        k = k_ref[0, 0].astype(mxu_dtype)                          # (L_K, D)
        # scores = Qr @ K^T: contraction over D, no explicit K transpose.
        s = lax.dot_general(qr, k, (((1,), (1,)), ((), ())),
                            preferred_element_type=jnp.float32) * scale
        # ProbMask rebuilt in-kernel: key position > selected query position -> masked.
        key_pos = lax.broadcasted_iota(jnp.int32, s.shape, 1)
        s = jnp.where(key_pos > mts_ref[0, 0], jnp.float32(-1e30), s)
        s_max = jnp.max(s, axis=-1, keepdims=True)
        p = jnp.exp(s - s_max)
        denom = jnp.sum(p, axis=-1, keepdims=True)
        if approx_recip:
            attn = p * pl.reciprocal(denom, approx=True)           # EUP slot, ~free
        else:
            attn = p / denom
        att_ref[...] = jnp.dot(attn.astype(mxu_dtype),
                               v_ref[0, 0].astype(mxu_dtype),
                               preferred_element_type=jnp.float32)  # (u, D)
        vsum_ref[...] = jnp.zeros_like(vsum_ref)                   # reset cumsum carry

    # -------- per L_Q tile: initial context = running cumsum(V) (mask_flag branch)
    v_tile = v_ref[0, 0, pl.ds(qi * tq, tq), :].astype(jnp.float32)  # (tq, D)
    row = lax.broadcasted_iota(jnp.int32, (tq, tq), 0)
    col = lax.broadcasted_iota(jnp.int32, (tq, tq), 1)
    tril = (row >= col).astype(jnp.float32)                        # (tq, tq) only
    ctx0 = vsum_ref[...] + jnp.dot(tril, v_tile, preferred_element_type=jnp.float32)
    vsum_ref[...] = ctx0[tq - 1:tq, :]         # carry: prefix sum through this tile

    # -------- scatter attended rows that fall in this tile (one-hot built in-kernel)
    mtl = mtl_ref[0, 0]                                            # (1, u) i32
    row_pos = lax.broadcasted_iota(jnp.int32, (tq, mtl.shape[-1]), 0) + qi * tq
    onehot = (row_pos == mtl).astype(jnp.float32)                  # (tq, u)
    selected = jnp.sum(onehot, axis=-1, keepdims=True)             # (tq, 1) in {0, 1}
    replacement = jnp.dot(onehot, att_ref[...], preferred_element_type=jnp.float32)
    ctx_ref[0, 0] = (ctx0 * (1.0 - selected) + replacement).astype(ctx_ref.dtype)


def _attention_context(Q_reduce, K, V, m_top, scale, tq, mxu_dtype):
    B, H, L_K, D = K.shape
    L_V = V.shape[2]
    u = Q_reduce.shape[2]
    n_qt = L_V // tq
    mt_sub = m_top[..., None]           # (B,H,u,1): u on sublanes (mask build)
    mt_lane = m_top[:, :, None, :]      # (B,H,1,u): u on lanes    (scatter build)
    approx = bool(jnp.dtype(mxu_dtype) != jnp.dtype(jnp.float32))
    kernel = functools.partial(_attn_context_kernel, scale=scale,
                               mxu_dtype=mxu_dtype, approx_recip=approx)
    # L_Q-tile axis is "arbitrary" (sequential) because of the running cumsum carry;
    # (B, H) stay "parallel" for megacore / v7x dual-TC sharding.
    return pl.pallas_call(
        kernel,
        out_shape=jax.ShapeDtypeStruct((B, H, L_V, D), V.dtype),
        grid=(B, H, n_qt),
        in_specs=[
            pl.BlockSpec((1, 1, u, D), lambda b, h, q: (b, h, 0, 0)),    # Q_reduce
            pl.BlockSpec((1, 1, L_K, D), lambda b, h, q: (b, h, 0, 0)),  # K (per head)
            pl.BlockSpec((1, 1, L_V, D), lambda b, h, q: (b, h, 0, 0)),  # V (per head)
            pl.BlockSpec((1, 1, u, 1), lambda b, h, q: (b, h, 0, 0)),    # top-u idx (sublane)
            pl.BlockSpec((1, 1, 1, u), lambda b, h, q: (b, h, 0, 0)),    # top-u idx (lane)
        ],
        out_specs=pl.BlockSpec((1, 1, tq, D), lambda b, h, q: (b, h, q, 0)),
        scratch_shapes=[
            pltpu.VMEM((u, D), jnp.float32),   # attended rows (computed once per head)
            pltpu.VMEM((1, D), jnp.float32),   # running column-sum carry for cumsum(V)
        ],
        compiler_params=pltpu.CompilerParams(
            dimension_semantics=("parallel", "parallel", "arbitrary"),
            vmem_limit_bytes=_vmem_limit_bytes()),
    )(Q_reduce, K, V, mt_sub, mt_lane)


# ----------------------------------------------------------------------------
# Wrapper: glue in JAX, heavy compute in Pallas.
# ----------------------------------------------------------------------------
def prob_attention(queries, keys, values, sample_key, *, factor=5, scale=None,
                   mxu_dtype=jnp.bfloat16, q_tile=None):
    """queries/keys/values: [B, L, H, D] (PyTorch forward input layout).

    Returns (context [B, H, L_Q, D], None), matching ProbAttention.forward with
    mask_flag=True, output_attention=False.
    """
    B, L_Q, H, D = queries.shape
    _, L_K, _, _ = keys.shape
    L_V = values.shape[1]
    assert L_Q == L_V, "mask_flag=True path requires L_Q == L_V (as in the PyTorch module)"

    Q = jnp.transpose(queries, (0, 2, 1, 3))   # [B, H, L_Q, D]
    K = jnp.transpose(keys, (0, 2, 1, 3))      # [B, H, L_K, D]
    V = jnp.transpose(values, (0, 2, 1, 3))    # [B, H, L_V, D]

    U_part, u = _informer_sizes(L_Q, L_K, factor)
    index_sample = _sample_indices(sample_key, L_Q, U_part, L_K)

    tq = q_tile if q_tile is not None else _choose_q_tile(L_Q, 512)
    assert L_Q % tq == 0 and (tq % 8 == 0 or tq == L_Q), "invalid L_Q tile"

    # ---- Pallas kernel 1: sparsity measure M (per query, per head) ----
    M = _sparsity_measure(Q, K, index_sample, tq)                 # [B, H, L_Q]

    # ---- glue: top-u selection + small Q row gather (no clean in-kernel top-k) ----
    M_top = lax.top_k(M, u)[1].astype(jnp.int32)                  # [B, H, u]
    Q_reduce = jnp.take_along_axis(Q, M_top[..., None], axis=2)   # [B, H, u, D]

    scale_ = scale if scale is not None else 1.0 / math.sqrt(D)

    # ---- Pallas kernel 2: attention on selected queries + context assembly ----
    # TODO(synk): for D < 128 the context stores are not lane-dense; batching
    # ceil(128/D) heads per grid step (context laid out as [B, L, H*D]) would widen
    # stores to full vregs at the cost of per-head loops inside the kernel.
    context = _attention_context(Q_reduce, K, V, M_top, scale_, tq, mxu_dtype)

    # TODO(synk): nn.Dropout is declared in the PyTorch __init__ but never applied
    # in forward, so it is intentionally omitted here.
    return context, None


# ----------------------------------------------------------------------------
# Pure-JAX reference (mirrors the torch code) for correctness checks.
# ----------------------------------------------------------------------------
def prob_attention_reference(queries, keys, values, sample_key, *, factor=5, scale=None):
    B, L_Q, H, D = queries.shape
    _, L_K, _, _ = keys.shape
    Q = jnp.transpose(queries, (0, 2, 1, 3))
    K = jnp.transpose(keys, (0, 2, 1, 3))
    V = jnp.transpose(values, (0, 2, 1, 3))
    U_part, u = _informer_sizes(L_Q, L_K, factor)
    index_sample = _sample_indices(sample_key, L_Q, U_part, L_K)
    K_sample = K[:, :, index_sample, :]
    QK_sample = jnp.einsum("bhqe,bhqse->bhqs", Q, K_sample)
    M = QK_sample.max(-1) - QK_sample.sum(-1) / L_K
    M_top = lax.top_k(M, u)[1]
    Q_reduce = jnp.take_along_axis(Q, M_top[..., None], axis=2)
    scores = jnp.einsum("bhue,bhke->bhuk", Q_reduce, K)
    scale_ = scale if scale is not None else 1.0 / math.sqrt(D)
    scores = scores * scale_
    mask = jnp.arange(L_K)[None, None, None, :] > M_top[..., None]
    scores = jnp.where(mask, -jnp.inf, scores)
    attn = jax.nn.softmax(scores, axis=-1)
    ctx = jnp.cumsum(V, axis=-2)
    upd = jnp.einsum("bhuk,bhkd->bhud", attn, V)
    bidx = jnp.arange(B)[:, None, None]
    hidx = jnp.arange(H)[None, :, None]
    ctx = ctx.at[bidx, hidx, M_top].set(upd)
    return ctx


if __name__ == "__main__":
    # Small shapes consistent with the module: B=2, L=16, H=2, D=8.
    B, L, H, D = 2, 16, 2, 8
    root = jax.random.PRNGKey(0)
    kq, kk, kv, ksamp = jax.random.split(root, 4)
    queries = jax.random.normal(kq, (B, L, H, D), dtype=jnp.float32)
    keys = jax.random.normal(kk, (B, L, H, D), dtype=jnp.float32)
    values = jax.random.normal(kv, (B, L, H, D), dtype=jnp.float32)

    ref = prob_attention_reference(queries, keys, values, ksamp)

    # f32 MXU path, single L_Q tile: tight check against the pure-JAX reference.
    ctx_f32, attn = prob_attention(queries, keys, values, ksamp, mxu_dtype=jnp.float32)
    ctx_f32 = jax.block_until_ready(ctx_f32)
    np.testing.assert_allclose(np.asarray(ctx_f32), np.asarray(ref), rtol=1e-3, atol=1e-3)

    # f32 MXU path, two L_Q tiles: exercises the running-sum carry + tiled scatter.
    ctx_tiled, _ = prob_attention(queries, keys, values, ksamp,
                                  mxu_dtype=jnp.float32, q_tile=8)
    ctx_tiled = jax.block_until_ready(ctx_tiled)
    np.testing.assert_allclose(np.asarray(ctx_tiled), np.asarray(ref), rtol=1e-3, atol=1e-3)

    # Default bf16-MXU path (per perf guidance for v6e/v7x): bf16 operand rounding
    # gives ~1e-2-level differences vs. the f32 reference, so use a loose tolerance.
    ctx_bf16, _ = prob_attention(queries, keys, values, ksamp)
    ctx_bf16 = jax.block_until_ready(ctx_bf16)
    np.testing.assert_allclose(np.asarray(ctx_bf16), np.asarray(ref), rtol=5e-2, atol=5e-2)

    print("KERNEL_OK")
</pallas_src>

<mosaic_0001>
module attributes {stable_mosaic.version = 11 : i64} {
  func.func @_measure_kernel_gather(%arg0: i32, %arg1: i32, %arg2: i32, %arg3: memref<1x1x16x8xf32, #tpu.memory_space<vmem>>, %arg4: memref<1x1x16x8xf32, #tpu.memory_space<vmem>>, %arg5: memref<16x15xi32, #tpu.memory_space<vmem>>, %arg6: memref<1x1x16x1xf32, #tpu.memory_space<vmem>>) attributes {dimension_semantics = [#tpu.dimension_semantics<parallel>, #tpu.dimension_semantics<parallel>, #tpu.dimension_semantics<parallel>], iteration_bounds = array<i64: 2, 2, 1>, scalar_prefetch = 0 : i64, scratch_operands = 0 : i64, tpu.core_type = #tpu.core_type<tc>, window_params = [{transform_indices = @transform_0, window_bounds = array<i64: 1, 1, 16, 8>}, {transform_indices = @transform_1, window_bounds = array<i64: 1, 1, 16, 8>}, {transform_indices = @transform_2, window_bounds = array<i64: 16, 15>}, {transform_indices = @transform_3, window_bounds = array<i64: 1, 1, 16, 1>}]} {
    %c0 = arith.constant 0 : index
    %c0_0 = arith.constant 0 : index
    %c0_1 = arith.constant 0 : index
    %c0_2 = arith.constant 0 : index
    %0 = vector.load %arg3[%c0, %c0_0, %c0_1, %c0_2] : memref<1x1x16x8xf32, #tpu.memory_space<vmem>>, vector<1x1x16x8xf32>
    %1 = vector.shape_cast %0 : vector<1x1x16x8xf32> to vector<16x8xf32>
    %c0_3 = arith.constant 0 : index
    %c0_4 = arith.constant 0 : index
    %c0_5 = arith.constant 0 : index
    %c0_6 = arith.constant 0 : index
    %2 = vector.load %arg4[%c0_3, %c0_4, %c0_5, %c0_6] : memref<1x1x16x8xf32, #tpu.memory_space<vmem>>, vector<1x1x16x8xf32>
    %3 = vector.shape_cast %2 : vector<1x1x16x8xf32> to vector<16x8xf32>
    %cst = arith.constant dense<0.000000e+00> : vector<16x16xf32>
    %4 = tpu.matmul %1, %3, %cst {dimension_numbers = #tpu.dot_dimension_numbers<[1], [1], [0], [0], [0, 0, 1, 0], [], []>} : vector<16x8xf32>, vector<16x8xf32>, vector<16x16xf32> -> vector<16x16xf32>
    %c0_7 = arith.constant 0 : index
    %c0_8 = arith.constant 0 : index
    %5 = vector.load %arg5[%c0_7, %c0_8] : memref<16x15xi32, #tpu.memory_space<vmem>>, vector<16x15xi32>
    %c0_i32 = arith.constant 0 : i32
    %6 = vector.broadcast %c0_i32 : i32 to vector<16x15xi32>
    %7 = arith.cmpi slt, %5, %6 : vector<16x15xi32>
    %c16_i32 = arith.constant 16 : i32
    %8 = vector.broadcast %c16_i32 : i32 to vector<16x15xi32>
    %9 = arith.addi %5, %8 : vector<16x15xi32>
    %10 = arith.select %7, %9, %5 : vector<16x15xi1>, vector<16x15xi32>
    %11 = vector.shape_cast %10 : vector<16x15xi32> to vector<16x15x1xi32>
    %12 = vector.shape_cast %11 : vector<16x15x1xi32> to vector<16x15xi32>
    %13 = tpu.dynamic_gather %4[%12] in [1] : vector<16x16xf32>, vector<16x15xi32> -> vector<16x15xf32>
    %cst_9 = arith.constant dense<0xFF800000> : vector<16xf32>
    %14 = vector.multi_reduction <maximumf>, %13, %cst_9 [1] : vector<16x15xf32> to vector<16xf32>
    %cst_10 = arith.constant dense<0.000000e+00> : vector<16xf32>
    %15 = vector.multi_reduction <add>, %13, %cst_10 [1] : vector<16x15xf32> to vector<16xf32>
    %cst_11 = arith.constant 6.250000e-02 : f32
    %16 = vector.broadcast %cst_11 : f32 to vector<16xf32>
    %17 = arith.mulf %15, %16 : vector<16xf32>
    %18 = arith.subf %14, %17 : vector<16xf32>
    %19 = vector.shape_cast %18 : vector<16xf32> to vector<16x1xf32>
    %c0_12 = arith.constant 0 : index
    %c0_13 = arith.constant 0 : index
    %c0_14 = arith.constant 0 : index
    %c0_15 = arith.constant 0 : index
    %20 = vector.load %arg6[%c0_12, %c0_13, %c0_14, %c0_15] : memref<1x1x16x1xf32, #tpu.memory_space<vmem>>, vector<1x1x16x1xf32>
    %21 = vector.shape_cast %20 : vector<1x1x16x1xf32> to vector<16x1xf32>
    %22 = vector.shape_cast %19 : vector<16x1xf32> to vector<1x1x16x1xf32>
    tpu.vector_store %arg6[%c0_12, %c0_13, %c0_14, %c0_15], %22 {strides = array<i32>} : memref<1x1x16x1xf32, #tpu.memory_space<vmem>>, vector<1x1x16x1xf32>,
    return
  }
  func.func @transform_0(%arg0: i32, %arg1: i32, %arg2: i32) -> (i32, i32, i32, i32) {
    %c0_i32 = arith.constant 0 : i32
    %c0_i32_0 = arith.constant 0 : i32
    return %arg0, %arg1, %arg2, %c0_i32 : i32, i32, i32, i32
  }
  func.func @transform_1(%arg0: i32, %arg1: i32, %arg2: i32) -> (i32, i32, i32, i32) {
    %c0_i32 = arith.constant 0 : i32
    %c0_i32_0 = arith.constant 0 : i32
    %c0_i32_1 = arith.constant 0 : i32
    return %arg0, %arg1, %c0_i32, %c0_i32_0 : i32, i32, i32, i32
  }
  func.func @transform_2(%arg0: i32, %arg1: i32, %arg2: i32) -> (i32, i32) {
    %c0_i32 = arith.constant 0 : i32
    %c0_i32_0 = arith.constant 0 : i32
    return %arg2, %c0_i32 : i32, i32
  }
  func.func @transform_3(%arg0: i32, %arg1: i32, %arg2: i32) -> (i32, i32, i32, i32) {
    %c0_i32 = arith.constant 0 : i32
    %c0_i32_0 = arith.constant 0 : i32
    return %arg0, %arg1, %arg2, %c0_i32 : i32, i32, i32, i32
  }
}

module attributes {stable_mosaic.version = 11 : i64} {
  func.func @_measure_kernel_dense(%arg0: i32, %arg1: i32, %arg2: i32, %arg3: memref<1x1x16x8xf32, #tpu.memory_space<vmem>>, %arg4: memref<1x1x16x15x8xf32, #tpu.memory_space<vmem>>, %arg5: memref<1x1x16x1xf32, #tpu.memory_space<vmem>>) attributes {dimension_semantics = [#tpu.dimension_semantics<parallel>, #tpu.dimension_semantics<parallel>, #tpu.dimension_semantics<parallel>], iteration_bounds = array<i64: 2, 2, 1>, scalar_prefetch = 0 : i64, scratch_operands = 0 : i64, tpu.core_type = #tpu.core_type<tc>, window_params = [{transform_indices = @transform_0, window_bounds = array<i64: 1, 1, 16, 8>}, {transform_indices = @transform_1, window_bounds = array<i64: 1, 1, 16, 15, 8>}, {transform_indices = @transform_2, window_bounds = array<i64: 1, 1, 16, 1>}]} {
    %c0 = arith.constant 0 : index
    %c0_0 = arith.constant 0 : index
    %c0_1 = arith.constant 0 : index
    %c0_2 = arith.constant 0 : index
    %0 = vector.load %arg3[%c0, %c0_0, %c0_1, %c0_2] : memref<1x1x16x8xf32, #tpu.memory_space<vmem>>, vector<1x1x16x8xf32>
    %1 = vector.shape_cast %0 : vector<1x1x16x8xf32> to vector<16x8xf32>
    %c0_3 = arith.constant 0 : index
    %c0_4 = arith.constant 0 : index
    %c0_5 = arith.constant 0 : index
    %c0_6 = arith.constant 0 : index
    %c0_7 = arith.constant 0 : index
    %2 = vector.load %arg4[%c0_3, %c0_4, %c0_5, %c0_6, %c0_7] : memref<1x1x16x15x8xf32, #tpu.memory_space<vmem>>, vector<1x1x16x15x8xf32>
    %3 = vector.shape_cast %2 : vector<1x1x16x15x8xf32> to vector<16x15x8xf32>
    %4 = vector.shape_cast %1 : vector<16x8xf32> to vector<16x1x8xf32>
    %5 = vector.broadcast %4 : vector<16x1x8xf32> to vector<16x15x8xf32>
    %6 = arith.mulf %5, %3 : vector<16x15x8xf32>
    %cst = arith.constant dense<0.000000e+00> : vector<16x15xf32>
    %7 = vector.multi_reduction <add>, %6, %cst [2] : vector<16x15x8xf32> to vector<16x15xf32>
    %cst_8 = arith.constant dense<0xFF800000> : vector<16xf32>
    %8 = vector.multi_reduction <maximumf>, %7, %cst_8 [1] : vector<16x15xf32> to vector<16xf32>
    %cst_9 = arith.constant dense<0.000000e+00> : vector<16xf32>
    %9 = vector.multi_reduction <add>, %7, %cst_9 [1] : vector<16x15xf32> to vector<16xf32>
    %cst_10 = arith.constant 6.250000e-02 : f32
    %10 = vector.broadcast %cst_10 : f32 to vector<16xf32>
    %11 = arith.mulf %9, %10 : vector<16xf32>
    %12 = arith.subf %8, %11 : vector<16xf32>
    %13 = vector.shape_cast %12 : vector<16xf32> to vector<16x1xf32>
    %c0_11 = arith.constant 0 : index
    %c0_12 = arith.constant 0 : index
    %c0_13 = arith.constant 0 : index
    %c0_14 = arith.constant 0 : index
    %14 = vector.load %arg5[%c0_11, %c0_12, %c0_13, %c0_14] : memref<1x1x16x1xf32, #tpu.memory_space<vmem>>, vector<1x1x16x1xf32>
    %15 = vector.shape_cast %14 : vector<1x1x16x1xf32> to vector<16x1xf32>
    %16 = vector.shape_cast %13 : vector<16x1xf32> to vector<1x1x16x1xf32>
    tpu.vector_store %arg5[%c0_11, %c0_12, %c0_13, %c0_14], %16 {strides = array<i32>} : memref<1x1x16x1xf32, #tpu.memory_space<vmem>>, vector<1x1x16x1xf32>,
    return
  }
  func.func @transform_0(%arg0: i32, %arg1: i32, %arg2: i32) -> (i32, i32, i32, i32) {
    %c0_i32 = arith.constant 0 : i32
    %c0_i32_0 = arith.constant 0 : i32
    return %arg0, %arg1, %arg2, %c0_i32 : i32, i32, i32, i32
  }
  func.func @transform_1(%arg0: i32, %arg1: i32, %arg2: i32) -> (i32, i32, i32, i32, i32) {
    %c0_i32 = arith.constant 0 : i32
    %c0_i32_0 = arith.constant 0 : i32
    %c0_i32_1 = arith.constant 0 : i32
    return %arg0, %arg1, %arg2, %c0_i32, %c0_i32_0 : i32, i32, i32, i32, i32
  }
  func.func @transform_2(%arg0: i32, %arg1: i32, %arg2: i32) -> (i32, i32, i32, i32) {
    %c0_i32 = arith.constant 0 : i32
    %c0_i32_0 = arith.constant 0 : i32
    return %arg0, %arg1, %arg2, %c0_i32 : i32, i32, i32, i32
  }
}

</mosaic_0001>

<llo_original>
// kernel: tpu_custom_call.1
$region0: #{tpu_custom_call.1}
  #allocation0 [shape = 'u32[]', space=smem, size = 0x4, offset = 0x4, fixed_abs, tag = 'smem constant byte address 0x4 - core index']
  #allocation1 [shape = 'u32[144,128]{1,0:T(1,128)}', space=vmem, size = 0x12000, scoped, tag = 'internal scratch']
  %s0 = inlined_call_operand.vmem [shape: f32[2,2,16,8], index: 0, kind: input, shape index: {}]
  %s1 = inlined_call_operand.vmem [shape: f32[2,2,16,8], index: 1, kind: input, shape index: {}]
  %s2 = inlined_call_operand.vmem [shape: s32[16,15], index: 2, kind: input, shape index: {}]
  %s3 = inlined_call_operand.vmem [shape: f32[2,2,16,1], index: 3, kind: output, shape index: {}]
  %s4 = sld [smem:[#allocation0]]
  $region45: #{tpu_custom_call.1} parent=0
    _
  %s6 = ssub.s32 1, %s4
  %s7 = scalar_select 0, %s6, %s4
  loop: start=0, step=1, limit=6
  $region2: #{tpu_custom_call.1} parent=0 // loop_pre_header
    _
  $region3: #{tpu_custom_call.1} parent=0 // loop_header
    %s9 = sphi 0, %s13
    %p10 = scmp.ge.s32.totalorder %s9, 6
    %s16 = sphi 0, %s35
    %s17 = sphi 0, %s31
    %s18 = sphi 0, %s27
    %s19 = sphi 0, %s16
    %s20 = sphi 0, %s17
    %s21 = sphi 0, %s18
    %s22 = sphi 0, %s19
    %s23 = sphi 0, %s20
    %s24 = sphi 0, %s21
    %s42 = sphi 0, %s44
    %s45 = sphi 0, %s42
    %s46 = sphi 0, %s45
    %s62 = sphi 0, %s46
    %s70 = sphi 0, %s72
    %s73 = sphi 0, %s70
    %s74 = sphi 0, %s73
    %s90 = sphi 0, %s74
    %s96 = sphi 0, %s98
    %s99 = sphi 0, %s96
    %s100 = sphi 0, %s99
    %s116 = sphi 0, %s100
    %s126 = sphi 0, %s128
    %s129 = sphi 0, %s126
    %s130 = sphi 0, %s129
    %s146 = sphi 0, %s130
  $region4: #{tpu_custom_call.1} parent=0 // loop_header_branch
    %12 = sbr.rel (%p10) target = $region8
  $region5: #{tpu_custom_call.1} parent=0 // loop_body
    %s14 = ssub.s32 %s9, 1
    %s15 = ssub.s32 %s9, 2
    %s25 = sadd.s32 1, %s18
    %p26 = scmp.ge.s32.totalorder %s25, 1
    %s27 = scalar_select %p26, 0, %s25
    %s28 = sadd.s32 1, %s17
    %s29 = scalar_select %p26, %s28, %s17
    %p30 = scmp.ge.s32.totalorder %s29, 2
    %s31 = scalar_select %p30, 0, %s29
    %s32 = sadd.s32 1, %s16
    %s33 = scalar_select %p30, %s32, %s16
    %p34 = scmp.ge.s32.totalorder %s33, 2
    %s35 = scalar_select %p34, 0, %s33
    %s36 = ssub.s32 %s16, %s35
    %s37 = ssub.s32 %s17, %s31
    %s38 = sor.u32 %s36, %s37
    %s39 = ssub.s32 %s18, %s27
    %s40 = sor.u32 %s38, %s39
    %p41 = scmp.eq.s32.totalorder %s40, 0
    %s43 = sadd.s32 %s42, 1
    %s44 = scalar_select %p41, %s42, %s43
    %p47 = pneg %p41
    %p48 = scmp.eq.s32.totalorder %s9, 3
    %p49 = por %p47, %p48
    %p50 = scmp.ne.s32.totalorder %s42, %s45
    %p51 = scmp.eq.s32.totalorder %s9, 0
    %p52 = por %p50, %p51
    %p53 = scmp.ne.s32.totalorder %s42, %s45
    %p54 = scmp.eq.s32.totalorder %s14, 3
    %p55 = por %p53, %p54
    %p56 = scmp.ne.s32.totalorder %s45, %s46
    %p57 = scmp.eq.s32.totalorder %s14, 0
    %p58 = por %p56, %p57
    %p59 = scmp.ne.s32.totalorder %s45, %s46
    %p60 = scmp.eq.s32.totalorder %s15, 3
    %p61 = por %p59, %p60
    %p63 = scmp.ne.s32.totalorder %s46, %s62
    %p64 = scmp.eq.s32.totalorder %s15, 0
    %p65 = por %p63, %p64
    %s66 = ssub.s32 %s16, %s35
    %s67 = ssub.s32 %s17, %s31
    %s68 = sor.u32 %s66, %s67
    %p69 = scmp.eq.s32.totalorder %s68, 0
    %s71 = sadd.s32 %s70, 1
    %s72 = scalar_select %p69, %s70, %s71
    %p75 = pneg %p69
    %p76 = scmp.eq.s32.totalorder %s9, 3
    %p77 = por %p75, %p76
    %p78 = scmp.ne.s32.totalorder %s70, %s73
    %p79 = scmp.eq.s32.totalorder %s9, 0
    %p80 = por %p78, %p79
    %p81 = scmp.ne.s32.totalorder %s70, %s73
    %p82 = scmp.eq.s32.totalorder %s14, 3
    %p83 = por %p81, %p82
    %p84 = scmp.ne.s32.totalorder %s73, %s74
    %p85 = scmp.eq.s32.totalorder %s14, 0
    %p86 = por %p84, %p85
    %p87 = scmp.ne.s32.totalorder %s73, %s74
    %p88 = scmp.eq.s32.totalorder %s15, 3
    %p89 = por %p87, %p88
    %p91 = scmp.ne.s32.totalorder %s74, %s90
    %p92 = scmp.eq.s32.totalorder %s15, 0
    %p93 = por %p91, %p92
    %s94 = ssub.s32 %s18, %s27
    %p95 = scmp.eq.s32.totalorder %s94, 0
    %s97 = sadd.s32 %s96, 1
    %s98 = scalar_select %p95, %s96, %s97
    %p101 = pneg %p95
    %p102 = scmp.eq.s32.totalorder %s9, 3
    %p103 = por %p101, %p102
    %p104 = scmp.ne.s32.totalorder %s96, %s99
    %p105 = scmp.eq.s32.totalorder %s9, 0
    %p106 = por %p104, %p105
    %p107 = scmp.ne.s32.totalorder %s96, %s99
    %p108 = scmp.eq.s32.totalorder %s14, 3
    %p109 = por %p107, %p108
    %p110 = scmp.ne.s32.totalorder %s99, %s100
    %p111 = scmp.eq.s32.totalorder %s14, 0
    %p112 = por %p110, %p111
    %p113 = scmp.ne.s32.totalorder %s99, %s100
    %p114 = scmp.eq.s32.totalorder %s15, 3
    %p115 = por %p113, %p114
    %p117 = scmp.ne.s32.totalorder %s100, %s116
    %p118 = scmp.eq.s32.totalorder %s15, 0
    %p119 = por %p117, %p118
    %s120 = ssub.s32 %s16, %s35
    %s121 = ssub.s32 %s17, %s31
    %s122 = sor.u32 %s120, %s121
    %s123 = ssub.s32 %s18, %s27
    %s124 = sor.u32 %s122, %s123
    %p125 = scmp.eq.s32.totalorder %s124, 0
    %s127 = sadd.s32 %s126, 1
    %s128 = scalar_select %p125, %s126, %s127
    %p131 = pneg %p125
    %p132 = scmp.eq.s32.totalorder %s9, 3
    %p133 = por %p131, %p132
    %p134 = scmp.ne.s32.totalorder %s126, %s129
    %p135 = scmp.eq.s32.totalorder %s9, 0
    %p136 = por %p134, %p135
    %p137 = scmp.ne.s32.totalorder %s126, %s129
    %p138 = scmp.eq.s32.totalorder %s14, 3
    %p139 = por %p137, %p138
    %p140 = scmp.ne.s32.totalorder %s129, %s130
    %p141 = scmp.eq.s32.totalorder %s14, 0
    %p142 = por %p140, %p141
    %p143 = scmp.ne.s32.totalorder %s129, %s130
    %p144 = scmp.eq.s32.totalorder %s15, 3
    %p145 = por %p143, %p144
    %p147 = scmp.ne.s32.totalorder %s130, %s146
    %p148 = scmp.eq.s32.totalorder %s15, 0
    %p149 = por %p147, %p148
    %p150 = scmp.le.s32.totalorder 1, %s9
    %p151 = scmp.lt.s32.totalorder %s9, 5
    %p152 = pnand %p150, %p151
    %p153 = pneg %p152
    // Predicated region
    $region9: #{tpu_custom_call.1} parent=5 // pred_check
      _
    $region10: #{tpu_custom_call.1} parent=5 // pred_check_branch
      %155 = sbr.rel (%p152) target = $region12
    $region11: #{tpu_custom_call.1} parent=5 // pred_region
      %s156 = ssub.s32 %s9, 1
      // Predicated region
      $region13: #{tpu_custom_call.1} parent=11 // pred_check
        %p157 = pneg %p112
      $region14: #{tpu_custom_call.1} parent=11 // pred_check_branch
        %159 = sbr.rel (%p157) target = $region16
      $region15: #{tpu_custom_call.1} parent=11 // pred_region
        %s160 = smul.u32 2, %s21
        %p161 = scmp.lt.s32.totalorder %s160, 1
        %s162 = scalar_select %p161, %s160, 1
        %s163 = smul.addr %s162, 8
        %s164 = scalar_lea.vmem %s2, %s163
        %s165 = smul.u32 2, %s21
      $region16: #{tpu_custom_call.1} parent=11 // pred_fallthru
        _
    $region12: #{tpu_custom_call.1} parent=5 // pred_fallthru
      _
    %p166 = scmp.lt.s32.totalorder %s9, 4
    // Predicated region
    $region17: #{tpu_custom_call.1} parent=5 // pred_check
      %p167 = pneg %p166
    $region18: #{tpu_custom_call.1} parent=5 // pred_check_branch
      %169 = sbr.rel (%p167) target = $region20
    $region19: #{tpu_custom_call.1} parent=5 // pred_region
      // Predicated region
      $region21: #{tpu_custom_call.1} parent=19 // pred_check
        %p170 = pneg %p52
      $region22: #{tpu_custom_call.1} parent=19 // pred_check_branch
        %172 = sbr.rel (%p170) target = $region24
      $region23: #{tpu_custom_call.1} parent=19 // pred_region
        %s173 = smul.u32 2, %s18
        %p174 = scmp.lt.s32.totalorder %s16, 1
        %s175 = scalar_select %p174, %s16, 1
        %p176 = scmp.lt.s32.totalorder %s17, 1
        %s177 = scalar_select %p176, %s17, 1
        %p178 = scmp.lt.s32.totalorder %s173, 1
        %s179 = scalar_select %p178, %s173, 1
        %s180 = smul.addr %s177, 2
        %s181 = sadd.s32 %s179, %s180
        %s182 = smul.addr %s175, 4
        %s183 = sadd.s32 %s181, %s182
        %s184 = smul.addr %s183, 8
        %s185 = scalar_lea.vmem %s0, %s184
        %s186 = smul.u32 2, %s18
      $region24: #{tpu_custom_call.1} parent=19 // pred_fallthru
        _
      // Predicated region
      $region25: #{tpu_custom_call.1} parent=19 // pred_check
        %p187 = pneg %p80
      $region26: #{tpu_custom_call.1} parent=19 // pred_check_branch
        %189 = sbr.rel (%p187) target = $region28
      $region27: #{tpu_custom_call.1} parent=19 // pred_region
        %p190 = scmp.lt.s32.totalorder %s16, 1
        %s191 = scalar_select %p190, %s16, 1
        %p192 = scmp.lt.s32.totalorder %s17, 1
        %s193 = scalar_select %p192, %s17, 1
        %s194 = smul.addr %s193, 2
        %s195 = smul.addr %s191, 4
        %s196 = sadd.s32 %s194, %s195
        %s197 = smul.addr %s196, 8
        %s198 = scalar_lea.vmem %s1, %s197
      $region28: #{tpu_custom_call.1} parent=19 // pred_fallthru
        _
    $region20: #{tpu_custom_call.1} parent=5 // pred_fallthru
      _
    %p199 = scmp.le.s32.totalorder 1, %s9
    %p200 = scmp.lt.s32.totalorder %s9, 5
    %p201 = pnand %p199, %p200
    %p202 = pneg %p201
    // Predicated region
    $region29: #{tpu_custom_call.1} parent=5 // pred_check
      _
    $region30: #{tpu_custom_call.1} parent=5 // pred_check_branch
      %204 = sbr.rel (%p201) target = $region32
    $region31: #{tpu_custom_call.1} parent=5 // pred_region
      %s205 = ssub.s32 %s9, 1
      %s206 = smul.u32 2, %s21
      %p207 = scmp.lt.s32.totalorder %s19, 1
      %s208 = scalar_select %p207, %s19, 1
      %p209 = scmp.lt.s32.totalorder %s20, 1
      %s210 = scalar_select %p209, %s20, 1
      %p211 = scmp.lt.s32.totalorder %s206, 1
      %s212 = scalar_select %p211, %s206, 1
      %s213 = smul.addr %s210, 2
      %s214 = sadd.s32 %s212, %s213
      %s215 = smul.addr %s208, 4
      %s216 = sadd.s32 %s214, %s215
      %s217 = smul.addr %s216, 8
      %s218 = scalar_lea.vmem %s0, %s217
      %p219 = pneg %p58
      %p220 = pneg %p55
      %p221 = scmp.lt.s32.totalorder %s19, 1
      %s222 = scalar_select %p221, %s19, 1
      %p223 = scmp.lt.s32.totalorder %s20, 1
      %s224 = scalar_select %p223, %s20, 1
      %s225 = smul.addr %s224, 2
      %s226 = smul.addr %s222, 4
      %s227 = sadd.s32 %s225, %s226
      %s228 = smul.addr %s227, 8
      %s229 = scalar_lea.vmem %s1, %s228
      %p230 = pneg %p86
      %p231 = pneg %p83
      %s232 = smul.u32 2, %s21
      %p233 = scmp.lt.s32.totalorder %s232, 1
      %s234 = scalar_select %p233, %s232, 1
      %s235 = smul.addr %s234, 8
      %s236 = scalar_lea.vmem %s2, %s235
      %p237 = pneg %p112
      %p238 = pneg %p109
      %p239 = pneg %p142
      %p240 = pneg %p139
      %s241 = smul.u32 2, %s21
      %p242 = scmp.lt.s32.totalorder %s19, 1
      %s243 = scalar_select %p242, %s19, 1
      %p244 = scmp.lt.s32.totalorder %s20, 1
      %s245 = scalar_select %p244, %s20, 1
      %p246 = scmp.lt.s32.totalorder %s241, 1
      %s247 = scalar_select %p246, %s241, 1
      %s248 = smul.addr %s245, 2
      %s249 = sadd.s32 %s247, %s248
      %s250 = smul.addr %s243, 4
      %s251 = sadd.s32 %s249, %s250
      %s252 = smul.addr %s251, 8
      %s253 = scalar_lea.vmem %s3, %s252
      %s254 = smul.u32 2, %s21
      %p255 = scmp.lt.s32.totalorder %s19, 1
      %s256 = scalar_select %p255, %s19, 1
      %p257 = scmp.lt.s32.totalorder %s20, 1
      %s258 = scalar_select %p257, %s20, 1
      %p259 = scmp.lt.s32.totalorder %s254, 1
      %s260 = scalar_select %p259, %s254, 1
      %s261 = smul.addr %s258, 2
      %s262 = sadd.s32 %s260, %s261
      %s263 = smul.addr %s256, 4
      %s264 = sadd.s32 %s262, %s263
      %s265 = smul.addr %s264, 8
      %s266 = scalar_lea.vmem %s0, %s265
      %s267 = smul.u32 2, %s21
      %p268 = scmp.lt.s32.totalorder %s19, 1
      %s269 = scalar_select %p268, %s19, 1
      %p270 = scmp.lt.s32.totalorder %s20, 1
      %s271 = scalar_select %p270, %s20, 1
      %s272 = smul.addr %s271, 2
      %s273 = smul.addr %s269, 4
      %s274 = sadd.s32 %s272, %s273
      %s275 = smul.addr %s274, 8
      %s276 = scalar_lea.vmem %s1, %s275
      %s277 = smul.u32 2, %s21
      %p278 = scmp.lt.s32.totalorder %s277, 1
      %s279 = scalar_select %p278, %s277, 1
      %s280 = smul.addr %s279, 8
      %s281 = scalar_lea.vmem %s2, %s280
      %s282 = smul.u32 2, %s21
      %s283 = smul.u32 2, %s21
      %p284 = scmp.lt.s32.totalorder %s19, 1
      %s285 = scalar_select %p284, %s19, 1
      %p286 = scmp.lt.s32.totalorder %s20, 1
      %s287 = scalar_select %p286, %s20, 1
      %p288 = scmp.lt.s32.totalorder %s283, 1
      %s289 = scalar_select %p288, %s283, 1
      %s290 = smul.addr %s287, 2
      %s291 = sadd.s32 %s289, %s290
      %s292 = smul.addr %s285, 4
      %s293 = sadd.s32 %s291, %s292
      %s294 = smul.addr %s293, 8
      %s295 = scalar_lea.vmem %s3, %s294
      %s296 = smul.u32 2, %s21
      %v297 = vld [vmem:[%s266] sm:$0xff]
      %v298 = vld [vmem:[%s266 + $0x8] sm:$0xff]
      %v299 = vld [vmem:[%s276] sm:$0xff]
      %v300 = vld [vmem:[%s276 + $0x8] sm:$0xff]
      %vm301 = vcmask 64512
      %v303 = vsel %vm301, %v297, 0
      %v306 = vsel %vm301, %v298, 0
      %v309 = vsel %vm301, %v299, 0
      %v312 = vsel %vm301, %v300, 0
      %314 = vmatprep.subr.mxu0 0.0
      %315 = vmatpush1.xpose.msra.mxu0 %v309
      %316 = vmatprep.subr.mxu0 0.0
      %317 = vmatpush1.xpose.msra.mxu0 %v312
      %318 = vmatprep.subr.mxu0 0.0
      %319 = vmatpush1.xpose.msra.mxu0 0.0
      %320 = vmatprep.subr.mxu0 0.0
      %321 = vmatpush1.xpose.msra.mxu0 0.0
      %322 = vmatprep.subr.mxu0 0.0
      %323 = vmatpush1.xpose.msra.mxu0 0.0
      %324 = vmatprep.subr.mxu0 0.0
      %325 = vmatpush1.xpose.msra.mxu0 0.0
      %326 = vmatprep.subr.mxu0 0.0
      %327 = vmatpush1.xpose.msra.mxu0 0.0
      %328 = vmatprep.subr.mxu0 0.0
      %329 = vmatpush1.xpose.msra.mxu0 0.0
      %330 = vmatprep.subr.mxu0 0.0
      %331 = vmatpush1.xpose.msra.mxu0 0.0
      %332 = vmatprep.subr.mxu0 0.0
      %333 = vmatpush1.xpose.msra.mxu0 0.0
      %334 = vmatprep.subr.mxu0 0.0
      %335 = vmatpush1.xpose.msra.mxu0 0.0
      %336 = vmatprep.subr.mxu0 0.0
      %337 = vmatpush1.xpose.msra.mxu0 0.0
      %338 = vmatprep.subr.mxu0 0.0
      %339 = vmatpush1.xpose.msra.mxu0 0.0
      %340 = vmatprep.subr.mxu0 0.0
      %341 = vmatpush1.xpose.msra.mxu0 0.0
      %342 = vmatprep.subr.mxu0 0.0
      %343 = vmatpush1.xpose.msra.mxu0 0.0
      %344 = vmatprep.subr.mxu0 0.0
      %345 = vmatpush1.xpose.msra.mxu0 0.0
      %346 = vmatprep.subr.mxu0 0.0
      %347 = vmatpush1.xpose.msra.mxu0 0.0
      %348 = vmatprep.subr.mxu0 0.0
      %349 = vmatpush1.xpose.msra.mxu0 0.0
      %350 = vmatprep.subr.mxu0 0.0
      %351 = vmatpush1.xpose.msra.mxu0 0.0
      %352 = vmatprep.subr.mxu0 0.0
      %353 = vmatpush1.xpose.msra.mxu0 0.0
      %354 = vmatprep.subr.mxu0 0.0
      %355 = vmatpush1.xpose.msra.mxu0 0.0
      %356 = vmatprep.subr.mxu0 0.0
      %357 = vmatpush1.xpose.msra.mxu0 0.0
      %358 = vmatprep.subr.mxu0 0.0
      %359 = vmatpush1.xpose.msra.mxu0 0.0
      %360 = vmatprep.subr.mxu0 0.0
      %361 = vmatpush1.xpose.msra.mxu0 0.0
      %362 = vmatprep.subr.mxu0 0.0
      %363 = vmatpush1.xpose.msra.mxu0 0.0
      %364 = vmatprep.subr.mxu0 0.0
      %365 = vmatpush1.xpose.msra.mxu0 0.0
      %366 = vmatprep.subr.mxu0 0.0
      %367 = vmatpush1.xpose.msra.mxu0 0.0
      %368 = vmatprep.subr.mxu0 0.0
      %369 = vmatpush1.xpose.msra.mxu0 0.0
      %370 = vmatprep.subr.mxu0 0.0
      %371 = vmatpush1.xpose.msra.mxu0 0.0
      %372 = vmatprep.subr.mxu0 0.0
      %373 = vmatpush1.xpose.msra.mxu0 0.0
      %374 = vmatprep.subr.mxu0 0.0
      %375 = vmatpush1.xpose.msra.mxu0 0.0
      %376 = vmatprep.subr.mxu0 0.0
      %377 = vmatpush1.xpose.msra.mxu0 0.0
      %378 = vmatprep.mubr.f32.mxu0 0.0
      %379 = vmatmul.mubr.f32.gmra.mrb[0].mxu0 %v303
      %v380 = vpop.f32.mrb[0].mxu0
      %v381 = vadd.f32 0.0, %v380
      %v382 = vpop.f32.mrb[0].mxu0
      %383 = vmatprep.mubr.f32.mxu0 0.0
      %384 = vmatmul.mubr.f32.gmra.mrb[0].mxu0 %v306
      %v385 = vpop.f32.mrb[0].mxu0
      %v386 = vadd.f32 0.0, %v385
      %v387 = vpop.f32.mrb[0].mxu0
      %388 = vdwg.mxu0
      %v389 = vld [vmem:[%s281] sm:$0xff]
      %v390 = vld [vmem:[%s281 + $0x8] sm:$0xff]
      %vm391 = vcmp.lt.s32.totalorder %v389, 0
      %vm392 = vcmp.lt.s32.totalorder %v390, 0
      %v393 = vadd.s32 %v389, 16
      %v394 = vadd.s32 %v390, 16
      %v395 = vsel %vm391, %v393, %v389
      %v396 = vsel %vm392, %v394, %v390
      %397 = vset.pattern.permute.xlu0 %v395
      %398 = vperm.xlu0 %397, %v381
      %v399 = vpop.permute.xlu0 %398
      %400 = vset.pattern.permute.xlu0 %v396
      %401 = vperm.xlu0 %400, %v386
      %v402 = vpop.permute.xlu0 %401
      %vm403 = vcmask 121856
      %v404 = vsel %vm403, %v399, -inf
      %405 = vmax.xlane.f32.xlu0 %v404
      %v406 = vpop.xlane.xlu0 %405
      %v407 = vsel %vm403, %v402, -inf
      %408 = vmax.xlane.f32.xlu0 %v407
      %v409 = vpop.xlane.xlu0 %408
      %v410 = vsel %vm403, %v399, 0.0
      %411 = vadd.xlane.f32.xlu0 %v410
      %v412 = vpop.xlane.xlu0 %411
      %v413 = vsel %vm403, %v402, 0.0
      %414 = vadd.xlane.f32.xlu0 %v413
      %v415 = vpop.xlane.xlu0 %414
      %v416 = vmul.f32 %v412, 0.0625
      %v417 = vmul.f32 %v415, 0.0625
      %v418 = vsub.f32 %v406, %v416
      %v419 = vsub.f32 %v409, %v417
      %vm420 = vcmask 7168
      %421 = vst.msk [vmem:[%s295] sm:$0xff] %vm420, %v418
      %422 = vst.msk [vmem:[%s295 + $0x8] sm:$0xff] %vm420, %v419
      %s423 = smul.u32 2, %s21
      %p424 = scmp.lt.s32.totalorder %s19, 1
      %s425 = scalar_select %p424, %s19, 1
      %p426 = scmp.lt.s32.totalorder %s20, 1
      %s427 = scalar_select %p426, %s20, 1
      %p428 = scmp.lt.s32.totalorder %s423, 1
      %s429 = scalar_select %p428, %s423, 1
      %s430 = smul.addr %s427, 2
      %s431 = sadd.s32 %s429, %s430
      %s432 = smul.addr %s425, 4
      %s433 = sadd.s32 %s431, %s432
      %s434 = smul.addr %s433, 8
      %s435 = scalar_lea.vmem %s3, %s434
      // Predicated region
      $region33: #{tpu_custom_call.1} parent=31 // pred_check
        %p436 = pneg %p139
      $region34: #{tpu_custom_call.1} parent=31 // pred_check_branch
        %438 = sbr.rel (%p436) target = $region36
      $region35: #{tpu_custom_call.1} parent=31 // pred_region
        %s439 = smul.u32 2, %s21
      $region36: #{tpu_custom_call.1} parent=31 // pred_fallthru
        _
    $region32: #{tpu_custom_call.1} parent=5 // pred_fallthru
      _
    %p440 = scmp.le.s32.totalorder 2, %s9
    // Predicated region
    $region37: #{tpu_custom_call.1} parent=5 // pred_check
      %p441 = pneg %p440
    $region38: #{tpu_custom_call.1} parent=5 // pred_check_branch
      %443 = sbr.rel (%p441) target = $region40
    $region39: #{tpu_custom_call.1} parent=5 // pred_region
      %s444 = ssub.s32 %s9, 2
      // Predicated region
      $region41: #{tpu_custom_call.1} parent=39 // pred_check
        %p445 = pneg %p145
      $region42: #{tpu_custom_call.1} parent=39 // pred_check_branch
        %447 = sbr.rel (%p445) target = $region44
      $region43: #{tpu_custom_call.1} parent=39 // pred_region
        %s448 = smul.u32 2, %s24
        %p449 = scmp.lt.s32.totalorder %s22, 1
        %s450 = scalar_select %p449, %s22, 1
        %p451 = scmp.lt.s32.totalorder %s23, 1
        %s452 = scalar_select %p451, %s23, 1
        %p453 = scmp.lt.s32.totalorder %s448, 1
        %s454 = scalar_select %p453, %s448, 1
        %s455 = smul.addr %s452, 2
        %s456 = sadd.s32 %s454, %s455
        %s457 = smul.addr %s450, 4
        %s458 = sadd.s32 %s456, %s457
        %s459 = smul.addr %s458, 8
        %s460 = scalar_lea.vmem %s3, %s459
      $region44: #{tpu_custom_call.1} parent=39 // pred_fallthru
        _
    $region40: #{tpu_custom_call.1} parent=5 // pred_fallthru
      _
  $region6: #{tpu_custom_call.1} parent=0 // loop_footer
    %s13 = sadd.s32 1, %s9
  $region7: #{tpu_custom_call.1} parent=0 // loop_footer_branch
    %8 = sbr.rel target = $region3
  $region8: #{tpu_custom_call.1} parent=0 // loop_exit
    _

// kernel: tpu_custom_call.1
$region0: #{tpu_custom_call.1}
  #allocation0 [shape = 'u32[]', space=smem, size = 0x4, offset = 0x4, fixed_abs, tag = 'smem constant byte address 0x4 - core index']
  #allocation1 [shape = 'u32[144,128]{1,0:T(1,128)}', space=vmem, size = 0x12000, scoped, tag = 'internal scratch']
  %s0 = inlined_call_operand.vmem [shape: f32[2,2,16,8], index: 0, kind: input, shape index: {}]
  %s1 = inlined_call_operand.vmem [shape: f32[2,2,16,15,8], index: 1, kind: input, shape index: {}]
  %s2 = inlined_call_operand.vmem [shape: f32[2,2,16,1], index: 2, kind: output, shape index: {}]
  %s3 = sld [smem:[#allocation0]]
  $region41: #{tpu_custom_call.1} parent=0
    _
  %s5 = ssub.s32 1, %s3
  %s6 = scalar_select 0, %s5, %s3
  loop: start=0, step=1, limit=6
  $region2: #{tpu_custom_call.1} parent=0 // loop_pre_header
    _
  $region3: #{tpu_custom_call.1} parent=0 // loop_header
    %s8 = sphi 0, %s12
    %p9 = scmp.ge.s32.totalorder %s8, 6
    %s15 = sphi 0, %s34
    %s16 = sphi 0, %s30
    %s17 = sphi 0, %s26
    %s18 = sphi 0, %s15
    %s19 = sphi 0, %s16
    %s20 = sphi 0, %s17
    %s21 = sphi 0, %s18
    %s22 = sphi 0, %s19
    %s23 = sphi 0, %s20
    %s41 = sphi 0, %s43
    %s44 = sphi 0, %s41
    %s45 = sphi 0, %s44
    %s61 = sphi 0, %s45
    %s71 = sphi 0, %s73
    %s74 = sphi 0, %s71
    %s75 = sphi 0, %s74
    %s91 = sphi 0, %s75
    %s101 = sphi 0, %s103
    %s104 = sphi 0, %s101
    %s105 = sphi 0, %s104
    %s121 = sphi 0, %s105
  $region4: #{tpu_custom_call.1} parent=0 // loop_header_branch
    %11 = sbr.rel (%p9) target = $region8
  $region5: #{tpu_custom_call.1} parent=0 // loop_body
    %s13 = ssub.s32 %s8, 1
    %s14 = ssub.s32 %s8, 2
    %s24 = sadd.s32 1, %s17
    %p25 = scmp.ge.s32.totalorder %s24, 1
    %s26 = scalar_select %p25, 0, %s24
    %s27 = sadd.s32 1, %s16
    %s28 = scalar_select %p25, %s27, %s16
    %p29 = scmp.ge.s32.totalorder %s28, 2
    %s30 = scalar_select %p29, 0, %s28
    %s31 = sadd.s32 1, %s15
    %s32 = scalar_select %p29, %s31, %s15
    %p33 = scmp.ge.s32.totalorder %s32, 2
    %s34 = scalar_select %p33, 0, %s32
    %s35 = ssub.s32 %s15, %s34
    %s36 = ssub.s32 %s16, %s30
    %s37 = sor.u32 %s35, %s36
    %s38 = ssub.s32 %s17, %s26
    %s39 = sor.u32 %s37, %s38
    %p40 = scmp.eq.s32.totalorder %s39, 0
    %s42 = sadd.s32 %s41, 1
    %s43 = scalar_select %p40, %s41, %s42
    %p46 = pneg %p40
    %p47 = scmp.eq.s32.totalorder %s8, 3
    %p48 = por %p46, %p47
    %p49 = scmp.ne.s32.totalorder %s41, %s44
    %p50 = scmp.eq.s32.totalorder %s8, 0
    %p51 = por %p49, %p50
    %p52 = scmp.ne.s32.totalorder %s41, %s44
    %p53 = scmp.eq.s32.totalorder %s13, 3
    %p54 = por %p52, %p53
    %p55 = scmp.ne.s32.totalorder %s44, %s45
    %p56 = scmp.eq.s32.totalorder %s13, 0
    %p57 = por %p55, %p56
    %p58 = scmp.ne.s32.totalorder %s44, %s45
    %p59 = scmp.eq.s32.totalorder %s14, 3
    %p60 = por %p58, %p59
    %p62 = scmp.ne.s32.totalorder %s45, %s61
    %p63 = scmp.eq.s32.totalorder %s14, 0
    %p64 = por %p62, %p63
    %s65 = ssub.s32 %s15, %s34
    %s66 = ssub.s32 %s16, %s30
    %s67 = sor.u32 %s65, %s66
    %s68 = ssub.s32 %s17, %s26
    %s69 = sor.u32 %s67, %s68
    %p70 = scmp.eq.s32.totalorder %s69, 0
    %s72 = sadd.s32 %s71, 1
    %s73 = scalar_select %p70, %s71, %s72
    %p76 = pneg %p70
    %p77 = scmp.eq.s32.totalorder %s8, 3
    %p78 = por %p76, %p77
    %p79 = scmp.ne.s32.totalorder %s71, %s74
    %p80 = scmp.eq.s32.totalorder %s8, 0
    %p81 = por %p79, %p80
    %p82 = scmp.ne.s32.totalorder %s71, %s74
    %p83 = scmp.eq.s32.totalorder %s13, 3
    %p84 = por %p82, %p83
    %p85 = scmp.ne.s32.totalorder %s74, %s75
    %p86 = scmp.eq.s32.totalorder %s13, 0
    %p87 = por %p85, %p86
    %p88 = scmp.ne.s32.totalorder %s74, %s75
    %p89 = scmp.eq.s32.totalorder %s14, 3
    %p90 = por %p88, %p89
    %p92 = scmp.ne.s32.totalorder %s75, %s91
    %p93 = scmp.eq.s32.totalorder %s14, 0
    %p94 = por %p92, %p93
    %s95 = ssub.s32 %s15, %s34
    %s96 = ssub.s32 %s16, %s30
    %s97 = sor.u32 %s95, %s96
    %s98 = ssub.s32 %s17, %s26
    %s99 = sor.u32 %s97, %s98
    %p100 = scmp.eq.s32.totalorder %s99, 0
    %s102 = sadd.s32 %s101, 1
    %s103 = scalar_select %p100, %s101, %s102
    %p106 = pneg %p100
    %p107 = scmp.eq.s32.totalorder %s8, 3
    %p108 = por %p106, %p107
    %p109 = scmp.ne.s32.totalorder %s101, %s104
    %p110 = scmp.eq.s32.totalorder %s8, 0
    %p111 = por %p109, %p110
    %p112 = scmp.ne.s32.totalorder %s101, %s104
    %p113 = scmp.eq.s32.totalorder %s13, 3
    %p114 = por %p112, %p113
    %p115 = scmp.ne.s32.totalorder %s104, %s105
    %p116 = scmp.eq.s32.totalorder %s13, 0
    %p117 = por %p115, %p116
    %p118 = scmp.ne.s32.totalorder %s104, %s105
    %p119 = scmp.eq.s32.totalorder %s14, 3
    %p120 = por %p118, %p119
    %p122 = scmp.ne.s32.totalorder %s105, %s121
    %p123 = scmp.eq.s32.totalorder %s14, 0
    %p124 = por %p122, %p123
    %p125 = scmp.le.s32.totalorder 1, %s8
    %p126 = scmp.lt.s32.totalorder %s8, 5
    %p127 = pnand %p125, %p126
    %p128 = pneg %p127
    // Predicated region
    $region9: #{tpu_custom_call.1} parent=5 // pred_check
      _
    $region10: #{tpu_custom_call.1} parent=5 // pred_check_branch
      %130 = sbr.rel (%p127) target = $region12
    $region11: #{tpu_custom_call.1} parent=5 // pred_region
      %s131 = ssub.s32 %s8, 1
    $region12: #{tpu_custom_call.1} parent=5 // pred_fallthru
      _
    %p132 = scmp.lt.s32.totalorder %s8, 4
    // Predicated region
    $region13: #{tpu_custom_call.1} parent=5 // pred_check
      %p133 = pneg %p132
    $region14: #{tpu_custom_call.1} parent=5 // pred_check_branch
      %135 = sbr.rel (%p133) target = $region16
    $region15: #{tpu_custom_call.1} parent=5 // pred_region
      // Predicated region
      $region17: #{tpu_custom_call.1} parent=15 // pred_check
        %p136 = pneg %p51
      $region18: #{tpu_custom_call.1} parent=15 // pred_check_branch
        %138 = sbr.rel (%p136) target = $region20
      $region19: #{tpu_custom_call.1} parent=15 // pred_region
        %s139 = smul.u32 2, %s17
        %p140 = scmp.lt.s32.totalorder %s15, 1
        %s141 = scalar_select %p140, %s15, 1
        %p142 = scmp.lt.s32.totalorder %s16, 1
        %s143 = scalar_select %p142, %s16, 1
        %p144 = scmp.lt.s32.totalorder %s139, 1
        %s145 = scalar_select %p144, %s139, 1
        %s146 = smul.addr %s143, 2
        %s147 = sadd.s32 %s145, %s146
        %s148 = smul.addr %s141, 4
        %s149 = sadd.s32 %s147, %s148
        %s150 = smul.addr %s149, 8
        %s151 = scalar_lea.vmem %s0, %s150
        %s152 = smul.u32 2, %s17
      $region20: #{tpu_custom_call.1} parent=15 // pred_fallthru
        _
      // Predicated region
      $region21: #{tpu_custom_call.1} parent=15 // pred_check
        %p153 = pneg %p81
      $region22: #{tpu_custom_call.1} parent=15 // pred_check_branch
        %155 = sbr.rel (%p153) target = $region24
      $region23: #{tpu_custom_call.1} parent=15 // pred_region
        %s156 = smul.u32 16, %s17
        %p157 = scmp.lt.s32.totalorder %s15, 1
        %s158 = scalar_select %p157, %s15, 1
        %p159 = scmp.lt.s32.totalorder %s16, 1
        %s160 = scalar_select %p159, %s16, 1
        %p161 = scmp.lt.s32.totalorder %s156, 15
        %s162 = scalar_select %p161, %s156, 15
        %s163 = smul.addr %s162, 2
        %s164 = smul.addr %s160, 32
        %s165 = sadd.s32 %s163, %s164
        %s166 = smul.addr %s158, 64
        %s167 = sadd.s32 %s165, %s166
        %s168 = smul.addr %s167, 8
        %s169 = scalar_lea.vmem %s1, %s168
        %s170 = smul.u32 16, %s17
      $region24: #{tpu_custom_call.1} parent=15 // pred_fallthru
        _
    $region16: #{tpu_custom_call.1} parent=5 // pred_fallthru
      _
    %p171 = scmp.le.s32.totalorder 1, %s8
    %p172 = scmp.lt.s32.totalorder %s8, 5
    %p173 = pnand %p171, %p172
    %p174 = pneg %p173
    // Predicated region
    $region25: #{tpu_custom_call.1} parent=5 // pred_check
      _
    $region26: #{tpu_custom_call.1} parent=5 // pred_check_branch
      %176 = sbr.rel (%p173) target = $region28
    $region27: #{tpu_custom_call.1} parent=5 // pred_region
      %s177 = ssub.s32 %s8, 1
      %s178 = smul.u32 2, %s20
      %p179 = scmp.lt.s32.totalorder %s18, 1
      %s180 = scalar_select %p179, %s18, 1
      %p181 = scmp.lt.s32.totalorder %s19, 1
      %s182 = scalar_select %p181, %s19, 1
      %p183 = scmp.lt.s32.totalorder %s178, 1
      %s184 = scalar_select %p183, %s178, 1
      %s185 = smul.addr %s182, 2
      %s186 = sadd.s32 %s184, %s185
      %s187 = smul.addr %s180, 4
      %s188 = sadd.s32 %s186, %s187
      %s189 = smul.addr %s188, 8
      %s190 = scalar_lea.vmem %s0, %s189
      %p191 = pneg %p57
      %p192 = pneg %p54
      %s193 = smul.u32 16, %s20
      %p194 = scmp.lt.s32.totalorder %s18, 1
      %s195 = scalar_select %p194, %s18, 1
      %p196 = scmp.lt.s32.totalorder %s19, 1
      %s197 = scalar_select %p196, %s19, 1
      %p198 = scmp.lt.s32.totalorder %s193, 15
      %s199 = scalar_select %p198, %s193, 15
      %s200 = smul.addr %s199, 2
      %s201 = smul.addr %s197, 32
      %s202 = sadd.s32 %s200, %s201
      %s203 = smul.addr %s195, 64
      %s204 = sadd.s32 %s202, %s203
      %s205 = smul.addr %s204, 8
      %s206 = scalar_lea.vmem %s1, %s205
      %p207 = pneg %p87
      %p208 = pneg %p84
      %p209 = pneg %p117
      %p210 = pneg %p114
      %s211 = smul.u32 2, %s20
      %p212 = scmp.lt.s32.totalorder %s18, 1
      %s213 = scalar_select %p212, %s18, 1
      %p214 = scmp.lt.s32.totalorder %s19, 1
      %s215 = scalar_select %p214, %s19, 1
      %p216 = scmp.lt.s32.totalorder %s211, 1
      %s217 = scalar_select %p216, %s211, 1
      %s218 = smul.addr %s215, 2
      %s219 = sadd.s32 %s217, %s218
      %s220 = smul.addr %s213, 4
      %s221 = sadd.s32 %s219, %s220
      %s222 = smul.addr %s221, 8
      %s223 = scalar_lea.vmem %s2, %s222
      %s224 = smul.u32 2, %s20
      %p225 = scmp.lt.s32.totalorder %s18, 1
      %s226 = scalar_select %p225, %s18, 1
      %p227 = scmp.lt.s32.totalorder %s19, 1
      %s228 = scalar_select %p227, %s19, 1
      %p229 = scmp.lt.s32.totalorder %s224, 1
      %s230 = scalar_select %p229, %s224, 1
      %s231 = smul.addr %s228, 2
      %s232 = sadd.s32 %s230, %s231
      %s233 = smul.addr %s226, 4
      %s234 = sadd.s32 %s232, %s233
      %s235 = smul.addr %s234, 8
      %s236 = scalar_lea.vmem %s0, %s235
      %s237 = smul.u32 2, %s20
      %s238 = smul.u32 16, %s20
      %p239 = scmp.lt.s32.totalorder %s18, 1
      %s240 = scalar_select %p239, %s18, 1
      %p241 = scmp.lt.s32.totalorder %s19, 1
      %s242 = scalar_select %p241, %s19, 1
      %p243 = scmp.lt.s32.totalorder %s238, 15
      %s244 = scalar_select %p243, %s238, 15
      %s245 = smul.addr %s244, 2
      %s246 = smul.addr %s242, 32
      %s247 = sadd.s32 %s245, %s246
      %s248 = smul.addr %s240, 64
      %s249 = sadd.s32 %s247, %s248
      %s250 = smul.addr %s249, 8
      %s251 = scalar_lea.vmem %s1, %s250
      %s252 = smul.u32 16, %s20
      %s253 = smul.u32 2, %s20
      %p254 = scmp.lt.s32.totalorder %s18, 1
      %s255 = scalar_select %p254, %s18, 1
      %p256 = scmp.lt.s32.totalorder %s19, 1
      %s257 = scalar_select %p256, %s19, 1
      %p258 = scmp.lt.s32.totalorder %s253, 1
      %s259 = scalar_select %p258, %s253, 1
      %s260 = smul.addr %s257, 2
      %s261 = sadd.s32 %s259, %s260
      %s262 = smul.addr %s255, 4
      %s263 = sadd.s32 %s261, %s262
      %s264 = smul.addr %s263, 8
      %s265 = scalar_lea.vmem %s2, %s264
      %s266 = smul.u32 2, %s20
      %v267 = vld [vmem:[%s236] sm:$0xff]
      %v268 = vld [vmem:[%s236 + $0x8] sm:$0xff]
      %v269 = vld [vmem:[%s251] sm:$0xff]
      %v270 = vld [vmem:[%s251 + $0x8] sm:$0x7f]
      %v271 = vld [vmem:[%s251 + $0x10] sm:$0xff]
      %v272 = vld [vmem:[%s251 + $0x18] sm:$0x7f]
      %v273 = vld [vmem:[%s251 + $0x20] sm:$0xff]
      %v274 = vld [vmem:[%s251 + $0x28] sm:$0x7f]
      %v275 = vld [vmem:[%s251 + $0x30] sm:$0xff]
      %v276 = vld [vmem:[%s251 + $0x38] sm:$0x7f]
      %v277 = vld [vmem:[%s251 + $0x40] sm:$0xff]
      %v278 = vld [vmem:[%s251 + $0x48] sm:$0x7f]
      %v279 = vld [vmem:[%s251 + $0x50] sm:$0xff]
      %v280 = vld [vmem:[%s251 + $0x58] sm:$0x7f]
      %v281 = vld [vmem:[%s251 + $0x60] sm:$0xff]
      %v282 = vld [vmem:[%s251 + $0x68] sm:$0x7f]
      %v283 = vld [vmem:[%s251 + $0x70] sm:$0xff]
      %v284 = vld [vmem:[%s251 + $0x78] sm:$0x7f]
      %v285 = vld [vmem:[%s251 + $0x80] sm:$0xff]
      %v286 = vld [vmem:[%s251 + $0x88] sm:$0x7f]
      %v287 = vld [vmem:[%s251 + $0x90] sm:$0xff]
      %v288 = vld [vmem:[%s251 + $0x98] sm:$0x7f]
      %v289 = vld [vmem:[%s251 + $0xa0] sm:$0xff]
      %v290 = vld [vmem:[%s251 + $0xa8] sm:$0x7f]
      %v291 = vld [vmem:[%s251 + $0xb0] sm:$0xff]
      %v292 = vld [vmem:[%s251 + $0xb8] sm:$0x7f]
      %v293 = vld [vmem:[%s251 + $0xc0] sm:$0xff]
      %v294 = vld [vmem:[%s251 + $0xc8] sm:$0x7f]
      %v295 = vld [vmem:[%s251 + $0xd0] sm:$0xff]
      %v296 = vld [vmem:[%s251 + $0xd8] sm:$0x7f]
      %v297 = vld [vmem:[%s251 + $0xe0] sm:$0xff]
      %v298 = vld [vmem:[%s251 + $0xe8] sm:$0x7f]
      %v299 = vld [vmem:[%s251 + $0xf0] sm:$0xff]
      %v300 = vld [vmem:[%s251 + $0xf8] sm:$0x7f]
      %v303 = vcombine.high %v267, %v267
      %v305 = vunpack.c.l.s4 1966171168
      %v306 = vunpack.c.0.s8 %v305
      %v307 = vlaneseq
      %v308 = vshrl.u32 %v307, 7
      %v309 = vsub.s32 %v306, %v308
      %v310 = vrot.slane %v267, %v309
      %v312 = vunpack.c.l.s4 1966171168
      %v313 = vunpack.c.0.s8 %v312
      %v314 = vlaneseq
      %v315 = vshrl.u32 %v314, 7
      %v316 = vsub.s32 %v313, %v315
      %v317 = vrot.slane %v303, %v316
      %v318 = vcombine.high %v310, %v310
      %v319 = vcombine.high %v317, %v317
      %v321 = vunpack.c.l.s4 1966171168
      %v322 = vunpack.c.0.s8 %v321
      %v323 = vlaneseq
      %v324 = vshrl.u32 %v323, 7
      %v325 = vsub.s32 %v322, %v324
      %v326 = vrot.slane %v310, %v325
      %v328 = vunpack.c.l.s4 1966171168
      %v329 = vunpack.c.0.s8 %v328
      %v330 = vlaneseq
      %v331 = vshrl.u32 %v330, 7
      %v332 = vsub.s32 %v329, %v331
      %v333 = vrot.slane %v317, %v332
      %v335 = vunpack.c.l.s4 1966171168
      %v336 = vunpack.c.0.s8 %v335
      %v337 = vlaneseq
      %v338 = vshrl.u32 %v337, 7
      %v339 = vsub.s32 %v336, %v338
      %v340 = vrot.slane %v318, %v339
      %v342 = vunpack.c.l.s4 1966171168
      %v343 = vunpack.c.0.s8 %v342
      %v344 = vlaneseq
      %v345 = vshrl.u32 %v344, 7
      %v346 = vsub.s32 %v343, %v345
      %v347 = vrot.slane %v319, %v346
      %v348 = vcombine.high %v326, %v326
      %v349 = vcombine.high %v333, %v333
      %v350 = vcombine.high %v340, %v340
      %v351 = vcombine.high %v347, %v347
      %v352 = vcombine.high %v268, %v268
      %v354 = vunpack.c.l.s4 1966171168
      %v355 = vunpack.c.0.s8 %v354
      %v356 = vlaneseq
      %v357 = vshrl.u32 %v356, 7
      %v358 = vsub.s32 %v355, %v357
      %v359 = vrot.slane %v268, %v358
      %v361 = vunpack.c.l.s4 1966171168
      %v362 = vunpack.c.0.s8 %v361
      %v363 = vlaneseq
      %v364 = vshrl.u32 %v363, 7
      %v365 = vsub.s32 %v362, %v364
      %v366 = vrot.slane %v352, %v365
      %v367 = vcombine.high %v359, %v359
      %v368 = vcombine.high %v366, %v366
      %v370 = vunpack.c.l.s4 1966171168
      %v371 = vunpack.c.0.s8 %v370
      %v372 = vlaneseq
      %v373 = vshrl.u32 %v372, 7
      %v374 = vsub.s32 %v371, %v373
      %v375 = vrot.slane %v359, %v374
      %v377 = vunpack.c.l.s4 1966171168
      %v378 = vunpack.c.0.s8 %v377
      %v379 = vlaneseq
      %v380 = vshrl.u32 %v379, 7
      %v381 = vsub.s32 %v378, %v380
      %v382 = vrot.slane %v366, %v381
      %v384 = vunpack.c.l.s4 1966171168
      %v385 = vunpack.c.0.s8 %v384
      %v386 = vlaneseq
      %v387 = vshrl.u32 %v386, 7
      %v388 = vsub.s32 %v385, %v387
      %v389 = vrot.slane %v367, %v388
      %v391 = vunpack.c.l.s4 1966171168
      %v392 = vunpack.c.0.s8 %v391
      %v393 = vlaneseq
      %v394 = vshrl.u32 %v393, 7
      %v395 = vsub.s32 %v392, %v394
      %v396 = vrot.slane %v368, %v395
      %v397 = vcombine.high %v375, %v375
      %v398 = vcombine.high %v382, %v382
      %v399 = vcombine.high %v389, %v389
      %v400 = vcombine.high %v396, %v396
      %v401 = vlaneseq
      %v402 = vshrl.u32 %v401, 7
      %v403 = vsub.s32 0, %v402
      %v404 = vrot.slane %v326, %v403
      %v405 = vlaneseq
      %v406 = vshrl.u32 %v405, 7
      %v407 = vsub.s32 0, %v406
      %v408 = vrot.slane %v340, %v407
      %v409 = vlaneseq
      %v410 = vshrl.u32 %v409, 7
      %v411 = vsub.s32 0, %v410
      %v412 = vrot.slane %v348, %v411
      %v413 = vlaneseq
      %v414 = vshrl.u32 %v413, 7
      %v415 = vsub.s32 0, %v414
      %v416 = vrot.slane %v350, %v415
      %v417 = vlaneseq
      %v418 = vshrl.u32 %v417, 7
      %v419 = vsub.s32 0, %v418
      %v420 = vrot.slane %v333, %v419
      %v421 = vlaneseq
      %v422 = vshrl.u32 %v421, 7
      %v423 = vsub.s32 0, %v422
      %v424 = vrot.slane %v347, %v423
      %v425 = vlaneseq
      %v426 = vshrl.u32 %v425, 7
      %v427 = vsub.s32 0, %v426
      %v428 = vrot.slane %v349, %v427
      %v429 = vlaneseq
      %v430 = vshrl.u32 %v429, 7
      %v431 = vsub.s32 0, %v430
      %v432 = vrot.slane %v351, %v431
      %v433 = vlaneseq
      %v434 = vshrl.u32 %v433, 7
      %v435 = vsub.s32 0, %v434
      %v436 = vrot.slane %v375, %v435
      %v437 = vlaneseq
      %v438 = vshrl.u32 %v437, 7
      %v439 = vsub.s32 0, %v438
      %v440 = vrot.slane %v389, %v439
      %v441 = vlaneseq
      %v442 = vshrl.u32 %v441, 7
      %v443 = vsub.s32 0, %v442
      %v444 = vrot.slane %v397, %v443
      %v445 = vlaneseq
      %v446 = vshrl.u32 %v445, 7
      %v447 = vsub.s32 0, %v446
      %v448 = vrot.slane %v399, %v447
      %v449 = vlaneseq
      %v450 = vshrl.u32 %v449, 7
      %v451 = vsub.s32 0, %v450
      %v452 = vrot.slane %v382, %v451
      %v453 = vlaneseq
      %v454 = vshrl.u32 %v453, 7
      %v455 = vsub.s32 0, %v454
      %v456 = vrot.slane %v396, %v455
      %v457 = vlaneseq
      %v458 = vshrl.u32 %v457, 7
      %v459 = vsub.s32 0, %v458
      %v460 = vrot.slane %v398, %v459
      %v461 = vlaneseq
      %v462 = vshrl.u32 %v461, 7
      %v463 = vsub.s32 0, %v462
      %v464 = vrot.slane %v400, %v463
      %v481 = vmul.f32 %v404, %v269
      %v482 = vmul.f32 %v404, %v270
      %v483 = vmul.f32 %v408, %v271
      %v484 = vmul.f32 %v408, %v272
      %v485 = vmul.f32 %v412, %v273
      %v486 = vmul.f32 %v412, %v274
      %v487 = vmul.f32 %v416, %v275
      %v488 = vmul.f32 %v416, %v276
      %v489 = vmul.f32 %v420, %v277
      %v490 = vmul.f32 %v420, %v278
      %v491 = vmul.f32 %v424, %v279
      %v492 = vmul.f32 %v424, %v280
      %v493 = vmul.f32 %v428, %v281
      %v494 = vmul.f32 %v428, %v282
      %v495 = vmul.f32 %v432, %v283
      %v496 = vmul.f32 %v432, %v284
      %v497 = vmul.f32 %v436, %v285
      %v498 = vmul.f32 %v436, %v286
      %v499 = vmul.f32 %v440, %v287
      %v500 = vmul.f32 %v440, %v288
      %v501 = vmul.f32 %v444, %v289
      %v502 = vmul.f32 %v444, %v290
      %v503 = vmul.f32 %v448, %v291
      %v504 = vmul.f32 %v448, %v292
      %v505 = vmul.f32 %v452, %v293
      %v506 = vmul.f32 %v452, %v294
      %v507 = vmul.f32 %v456, %v295
      %v508 = vmul.f32 %v456, %v296
      %v509 = vmul.f32 %v460, %v297
      %v510 = vmul.f32 %v460, %v298
      %v511 = vmul.f32 %v464, %v299
      %v512 = vmul.f32 %v464, %v300
      %vm513 = vcmask 64512
      %v514 = vsel %vm513, %v481, 0.0
      %515 = vadd.xlane.f32.xlu0 %v514
      %v516 = vpop.xlane.xlu0 %515
      %vm517 = vcmask 63488
      %v518 = vsel %vm517, %v482, 0.0
      %519 = vadd.xlane.f32.xlu0 %v518
      %v520 = vpop.xlane.xlu0 %519
      %v521 = vsel %vm513, %v483, 0.0
      %522 = vadd.xlane.f32.xlu0 %v521
      %v523 = vpop.xlane.xlu0 %522
      %v524 = vsel %vm517, %v484, 0.0
      %525 = vadd.xlane.f32.xlu0 %v524
      %v526 = vpop.xlane.xlu0 %525
      %v527 = vsel %vm513, %v485, 0.0
      %528 = vadd.xlane.f32.xlu0 %v527
      %v529 = vpop.xlane.xlu0 %528
      %v530 = vsel %vm517, %v486, 0.0
      %531 = vadd.xlane.f32.xlu0 %v530
      %v532 = vpop.xlane.xlu0 %531
      %v533 = vsel %vm513, %v487, 0.0
      %534 = vadd.xlane.f32.xlu0 %v533
      %v535 = vpop.xlane.xlu0 %534
      %v536 = vsel %vm517, %v488, 0.0
      %537 = vadd.xlane.f32.xlu0 %v536
      %v538 = vpop.xlane.xlu0 %537
      %v539 = vsel %vm513, %v489, 0.0
      %540 = vadd.xlane.f32.xlu0 %v539
      %v541 = vpop.xlane.xlu0 %540
      %v542 = vsel %vm517, %v490, 0.0
      %543 = vadd.xlane.f32.xlu0 %v542
      %v544 = vpop.xlane.xlu0 %543
      %v545 = vsel %vm513, %v491, 0.0
      %546 = vadd.xlane.f32.xlu0 %v545
      %v547 = vpop.xlane.xlu0 %546
      %v548 = vsel %vm517, %v492, 0.0
      %549 = vadd.xlane.f32.xlu0 %v548
      %v550 = vpop.xlane.xlu0 %549
      %v551 = vsel %vm513, %v493, 0.0
      %552 = vadd.xlane.f32.xlu0 %v551
      %v553 = vpop.xlane.xlu0 %552
      %v554 = vsel %vm517, %v494, 0.0
      %555 = vadd.xlane.f32.xlu0 %v554
      %v556 = vpop.xlane.xlu0 %555
      %v557 = vsel %vm513, %v495, 0.0
      %558 = vadd.xlane.f32.xlu0 %v557
      %v559 = vpop.xlane.xlu0 %558
      %v560 = vsel %vm517, %v496, 0.0
      %561 = vadd.xlane.f32.xlu0 %v560
      %v562 = vpop.xlane.xlu0 %561
      %v563 = vsel %vm513, %v497, 0.0
      %564 = vadd.xlane.f32.xlu0 %v563
      %v565 = vpop.xlane.xlu0 %564
      %v566 = vsel %vm517, %v498, 0.0
      %567 = vadd.xlane.f32.xlu0 %v566
      %v568 = vpop.xlane.xlu0 %567
      %v569 = vsel %vm513, %v499, 0.0
      %570 = vadd.xlane.f32.xlu0 %v569
      %v571 = vpop.xlane.xlu0 %570
      %v572 = vsel %vm517, %v500, 0.0
      %573 = vadd.xlane.f32.xlu0 %v572
      %v574 = vpop.xlane.xlu0 %573
      %v575 = vsel %vm513, %v501, 0.0
      %576 = vadd.xlane.f32.xlu0 %v575
      %v577 = vpop.xlane.xlu0 %576
      %v578 = vsel %vm517, %v502, 0.0
      %579 = vadd.xlane.f32.xlu0 %v578
      %v580 = vpop.xlane.xlu0 %579
      %v581 = vsel %vm513, %v503, 0.0
      %582 = vadd.xlane.f32.xlu0 %v581
      %v583 = vpop.xlane.xlu0 %582
      %v584 = vsel %vm517, %v504, 0.0
      %585 = vadd.xlane.f32.xlu0 %v584
      %v586 = vpop.xlane.xlu0 %585
      %v587 = vsel %vm513, %v505, 0.0
      %588 = vadd.xlane.f32.xlu0 %v587
      %v589 = vpop.xlane.xlu0 %588
      %v590 = vsel %vm517, %v506, 0.0
      %591 = vadd.xlane.f32.xlu0 %v590
      %v592 = vpop.xlane.xlu0 %591
      %v593 = vsel %vm513, %v507, 0.0
      %594 = vadd.xlane.f32.xlu0 %v593
      %v595 = vpop.xlane.xlu0 %594
      %v596 = vsel %vm517, %v508, 0.0
      %597 = vadd.xlane.f32.xlu0 %v596
      %v598 = vpop.xlane.xlu0 %597
      %v599 = vsel %vm513, %v509, 0.0
      %600 = vadd.xlane.f32.xlu0 %v599
      %v601 = vpop.xlane.xlu0 %600
      %v602 = vsel %vm517, %v510, 0.0
      %603 = vadd.xlane.f32.xlu0 %v602
      %v604 = vpop.xlane.xlu0 %603
      %v605 = vsel %vm513, %v511, 0.0
      %606 = vadd.xlane.f32.xlu0 %v605
      %v607 = vpop.xlane.xlu0 %606
      %v608 = vsel %vm517, %v512, 0.0
      %609 = vadd.xlane.f32.xlu0 %v608
      %v610 = vpop.xlane.xlu0 %609
      %v643 = vlaneseq
      %v644 = vand.u32 %v643, 127
      %v645 = vlaneseq
      %v646 = vshrl.u32 %v645, 7
      %v647 = vsub.s32 %v644, %v646
      %v648 = vrot.slane %v516, %v647
      %v649 = vadd.s32 %v644, 4294967288
      %v650 = vlaneseq
      %v651 = vshrl.u32 %v650, 7
      %v652 = vsub.s32 %v649, %v651
      %v653 = vrot.slane %v520, %v652
      %vm654 = vcmask 130112
      %v655 = vsel %vm654, %v653, %v648
      %v656 = vlaneseq
      %v657 = vshrl.u32 %v656, 7
      %v658 = vsub.s32 %v644, %v657
      %v659 = vrot.slane %v523, %v658
      %v660 = vlaneseq
      %v661 = vshrl.u32 %v660, 7
      %v662 = vsub.s32 %v649, %v661
      %v663 = vrot.slane %v526, %v662
      %v664 = vsel %vm654, %v663, %v659
      %v665 = vlaneseq
      %v666 = vshrl.u32 %v665, 7
      %v667 = vsub.s32 %v644, %v666
      %v668 = vrot.slane %v529, %v667
      %v669 = vlaneseq
      %v670 = vshrl.u32 %v669, 7
      %v671 = vsub.s32 %v649, %v670
      %v672 = vrot.slane %v532, %v671
      %v673 = vsel %vm654, %v672, %v668
      %v674 = vlaneseq
      %v675 = vshrl.u32 %v674, 7
      %v676 = vsub.s32 %v644, %v675
      %v677 = vrot.slane %v535, %v676
      %v678 = vlaneseq
      %v679 = vshrl.u32 %v678, 7
      %v680 = vsub.s32 %v649, %v679
      %v681 = vrot.slane %v538, %v680
      %v682 = vsel %vm654, %v681, %v677
      %v683 = vlaneseq
      %v684 = vshrl.u32 %v683, 7
      %v685 = vsub.s32 %v644, %v684
      %v686 = vrot.slane %v541, %v685
      %v687 = vlaneseq
      %v688 = vshrl.u32 %v687, 7
      %v689 = vsub.s32 %v649, %v688
      %v690 = vrot.slane %v544, %v689
      %v691 = vsel %vm654, %v690, %v686
      %v692 = vlaneseq
      %v693 = vshrl.u32 %v692, 7
      %v694 = vsub.s32 %v644, %v693
      %v695 = vrot.slane %v547, %v694
      %v696 = vlaneseq
      %v697 = vshrl.u32 %v696, 7
      %v698 = vsub.s32 %v649, %v697
      %v699 = vrot.slane %v550, %v698
      %v700 = vsel %vm654, %v699, %v695
      %v701 = vlaneseq
      %v702 = vshrl.u32 %v701, 7
      %v703 = vsub.s32 %v644, %v702
      %v704 = vrot.slane %v553, %v703
      %v705 = vlaneseq
      %v706 = vshrl.u32 %v705, 7
      %v707 = vsub.s32 %v649, %v706
      %v708 = vrot.slane %v556, %v707
      %v709 = vsel %vm654, %v708, %v704
      %v710 = vlaneseq
      %v711 = vshrl.u32 %v710, 7
      %v712 = vsub.s32 %v644, %v711
      %v713 = vrot.slane %v559, %v712
      %v714 = vlaneseq
      %v715 = vshrl.u32 %v714, 7
      %v716 = vsub.s32 %v649, %v715
      %v717 = vrot.slane %v562, %v716
      %v718 = vsel %vm654, %v717, %v713
      %v719 = vlaneseq
      %v720 = vshrl.u32 %v719, 7
      %v721 = vsub.s32 %v644, %v720
      %v722 = vrot.slane %v565, %v721
      %v723 = vlaneseq
      %v724 = vshrl.u32 %v723, 7
      %v725 = vsub.s32 %v649, %v724
      %v726 = vrot.slane %v568, %v725
      %v727 = vsel %vm654, %v726, %v722
      %v728 = vlaneseq
      %v729 = vshrl.u32 %v728, 7
      %v730 = vsub.s32 %v644, %v729
      %v731 = vrot.slane %v571, %v730
      %v732 = vlaneseq
      %v733 = vshrl.u32 %v732, 7
      %v734 = vsub.s32 %v649, %v733
      %v735 = vrot.slane %v574, %v734
      %v736 = vsel %vm654, %v735, %v731
      %v737 = vlaneseq
      %v738 = vshrl.u32 %v737, 7
      %v739 = vsub.s32 %v644, %v738
      %v740 = vrot.slane %v577, %v739
      %v741 = vlaneseq
      %v742 = vshrl.u32 %v741, 7
      %v743 = vsub.s32 %v649, %v742
      %v744 = vrot.slane %v580, %v743
      %v745 = vsel %vm654, %v744, %v740
      %v746 = vlaneseq
      %v747 = vshrl.u32 %v746, 7
      %v748 = vsub.s32 %v644, %v747
      %v749 = vrot.slane %v583, %v748
      %v750 = vlaneseq
      %v751 = vshrl.u32 %v750, 7
      %v752 = vsub.s32 %v649, %v751
      %v753 = vrot.slane %v586, %v752
      %v754 = vsel %vm654, %v753, %v749
      %v755 = vlaneseq
      %v756 = vshrl.u32 %v755, 7
      %v757 = vsub.s32 %v644, %v756
      %v758 = vrot.slane %v589, %v757
      %v759 = vlaneseq
      %v760 = vshrl.u32 %v759, 7
      %v761 = vsub.s32 %v649, %v760
      %v762 = vrot.slane %v592, %v761
      %v763 = vsel %vm654, %v762, %v758
      %v764 = vlaneseq
      %v765 = vshrl.u32 %v764, 7
      %v766 = vsub.s32 %v644, %v765
      %v767 = vrot.slane %v595, %v766
      %v768 = vlaneseq
      %v769 = vshrl.u32 %v768, 7
      %v770 = vsub.s32 %v649, %v769
      %v771 = vrot.slane %v598, %v770
      %v772 = vsel %vm654, %v771, %v767
      %v773 = vlaneseq
      %v774 = vshrl.u32 %v773, 7
      %v775 = vsub.s32 %v644, %v774
      %v776 = vrot.slane %v601, %v775
      %v777 = vlaneseq
      %v778 = vshrl.u32 %v777, 7
      %v779 = vsub.s32 %v649, %v778
      %v780 = vrot.slane %v604, %v779
      %v781 = vsel %vm654, %v780, %v776
      %v782 = vlaneseq
      %v783 = vshrl.u32 %v782, 7
      %v784 = vsub.s32 %v644, %v783
      %v785 = vrot.slane %v607, %v784
      %v786 = vlaneseq
      %v787 = vshrl.u32 %v786, 7
      %v788 = vsub.s32 %v649, %v787
      %v789 = vrot.slane %v610, %v788
      %v790 = vsel %vm654, %v789, %v785
      %vm791 = vcmask 1041409
      %v792 = vsel %vm791, %v664, %v655
      %vm793 = vcmask 1042434
      %v794 = vsel %vm793, %v673, %v792
      %vm795 = vcmask 1043459
      %v796 = vsel %vm795, %v682, %v794
      %vm797 = vcmask 1044484
      %v798 = vsel %vm797, %v691, %v796
      %vm799 = vcmask 1045509
      %v800 = vsel %vm799, %v700, %v798
      %vm801 = vcmask 1046534
      %v802 = vsel %vm801, %v709, %v800
      %vm803 = vcmask 1047559
      %v804 = vsel %vm803, %v718, %v802
      %v805 = vsel %vm791, %v736, %v727
      %v806 = vsel %vm793, %v745, %v805
      %v807 = vsel %vm795, %v754, %v806
      %v808 = vsel %vm797, %v763, %v807
      %v809 = vsel %vm799, %v772, %v808
      %v810 = vsel %vm801, %v781, %v809
      %v811 = vsel %vm803, %v790, %v810
      %vm814 = vcmask 121856
      %v815 = vsel %vm814, %v804, -inf
      %816 = vmax.xlane.f32.xlu0 %v815
      %v817 = vpop.xlane.xlu0 %816
      %v818 = vsel %vm814, %v811, -inf
      %819 = vmax.xlane.f32.xlu0 %v818
      %v820 = vpop.xlane.xlu0 %819
      %v821 = vsel %vm814, %v804, 0.0
      %822 = vadd.xlane.f32.xlu0 %v821
      %v823 = vpop.xlane.xlu0 %822
      %v824 = vsel %vm814, %v811, 0.0
      %825 = vadd.xlane.f32.xlu0 %v824
      %v826 = vpop.xlane.xlu0 %825
      %v827 = vmul.f32 %v823, 0.0625
      %v828 = vmul.f32 %v826, 0.0625
      %v829 = vsub.f32 %v817, %v827
      %v830 = vsub.f32 %v820, %v828
      %vm831 = vcmask 7168
      %832 = vst.msk [vmem:[%s265] sm:$0xff] %vm831, %v829
      %833 = vst.msk [vmem:[%s265 + $0x8] sm:$0xff] %vm831, %v830
      %s834 = smul.u32 2, %s20
      %p835 = scmp.lt.s32.totalorder %s18, 1
      %s836 = scalar_select %p835, %s18, 1
      %p837 = scmp.lt.s32.totalorder %s19, 1
      %s838 = scalar_select %p837, %s19, 1
      %p839 = scmp.lt.s32.totalorder %s834, 1
      %s840 = scalar_select %p839, %s834, 1
      %s841 = smul.addr %s838, 2
      %s842 = sadd.s32 %s840, %s841
      %s843 = smul.addr %s836, 4
      %s844 = sadd.s32 %s842, %s843
      %s845 = smul.addr %s844, 8
      %s846 = scalar_lea.vmem %s2, %s845
      // Predicated region
      $region29: #{tpu_custom_call.1} parent=27 // pred_check
        %p847 = pneg %p114
      $region30: #{tpu_custom_call.1} parent=27 // pred_check_branch
        %849 = sbr.rel (%p847) target = $region32
      $region31: #{tpu_custom_call.1} parent=27 // pred_region
        %s850 = smul.u32 2, %s20
      $region32: #{tpu_custom_call.1} parent=27 // pred_fallthru
        _
    $region28: #{tpu_custom_call.1} parent=5 // pred_fallthru
      _
    %p851 = scmp.le.s32.totalorder 2, %s8
    // Predicated region
    $region33: #{tpu_custom_call.1} parent=5 // pred_check
      %p852 = pneg %p851
    $region34: #{tpu_custom_call.1} parent=5 // pred_check_branch
      %854 = sbr.rel (%p852) target = $region36
    $region35: #{tpu_custom_call.1} parent=5 // pred_region
      %s855 = ssub.s32 %s8, 2
      // Predicated region
      $region37: #{tpu_custom_call.1} parent=35 // pred_check
        %p856 = pneg %p120
      $region38: #{tpu_custom_call.1} parent=35 // pred_check_branch
        %858 = sbr.rel (%p856) target = $region40
      $region39: #{tpu_custom_call.1} parent=35 // pred_region
        %s859 = smul.u32 2, %s23
        %p860 = scmp.lt.s32.totalorder %s21, 1
        %s861 = scalar_select %p860, %s21, 1
        %p862 = scmp.lt.s32.totalorder %s22, 1
        %s863 = scalar_select %p862, %s22, 1
        %p864 = scmp.lt.s32.totalorder %s859, 1
        %s865 = scalar_select %p864, %s859, 1
        %s866 = smul.addr %s863, 2
        %s867 = sadd.s32 %s865, %s866
        %s868 = smul.addr %s861, 4
        %s869 = sadd.s32 %s867, %s868
        %s870 = smul.addr %s869, 8
        %s871 = scalar_lea.vmem %s2, %s870
      $region40: #{tpu_custom_call.1} parent=35 // pred_fallthru
        _
    $region36: #{tpu_custom_call.1} parent=5 // pred_fallthru
      _
  $region6: #{tpu_custom_call.1} parent=0 // loop_footer
    %s12 = sadd.s32 1, %s8
  $region7: #{tpu_custom_call.1} parent=0 // loop_footer_branch
    %7 = sbr.rel target = $region3
  $region8: #{tpu_custom_call.1} parent=0 // loop_exit
    _

</llo_original>
